<compile_context>
chip_gen: v5e
topology: v5e:2x2
jax: 0.10.0
libtpu: 0.0.40
codegen_flags: <defaults>
</compile_context>

<pallas_src>
import numpy as np
import jax
import jax.numpy as jnp
from jax.experimental import pallas as pl
from jax.experimental.pallas import tpu as pltpu

# ----------------------------- problem sizes -----------------------------
B = 16          # batch size
K = 5           # num_objects (nodes per graph)
D = 4           # input_dim (per-object state dim)
A = 4           # action_dim
H = 32          # hidden_dim
DA = D + A                 # stacked node-feature rows (states + action)
DAH = D + A + H            # node-MLP input width
EPB = K * (K - 1)          # edges per batch element
N = B * K                  # total nodes  (80)
E = B * EPB                # total edges  (320)
LN_EPS = 1e-5


# ------------------------------ Pallas kernel -----------------------------
def transition_gnn_kernel(na_ref, eidx_ref, ridx_ref, w_ref, v_ref, out_ref):
    f32 = jnp.float32

    def dot(a, b):
        return jnp.dot(a, b, preferred_element_type=f32)

    def vcol(i, nrows=H):                 # i-th bias/gamma column, (nrows, 1)
        return v_ref[0:nrows, i:i + 1]

    def layer_norm(x, gamma, beta):       # normalize over feature axis 0
        mu = jnp.mean(x, axis=0, keepdims=True)
        xc = x - mu
        var = jnp.mean(xc * xc, axis=0, keepdims=True)
        s = gamma * jax.lax.rsqrt(var + LN_EPS)
        return xc * s + beta

    na = na_ref[...]                      # (DA, N)  = [states^T ; action^T]
    eidx = eidx_ref[...]                  # (2, E) int32: [row ; col]
    ridx = ridx_ref[...]                  # (E, 1) int32: row

    # ---- gather / scatter masks generated in-kernel (zero HBM bytes) -------
    n_iota = jax.lax.broadcasted_iota(jnp.int32, (N, E), 0)
    gs = (n_iota == eidx[0:1, :]).astype(f32)          # (N, E): 1 at row[e]
    gt = (n_iota == eidx[1:2, :]).astype(f32)          # (N, E): 1 at col[e]
    m_iota = jax.lax.broadcasted_iota(jnp.int32, (E, N), 1)
    seg = (m_iota == ridx).astype(f32)                 # (E, N): segment-sum

    # ---- edge MLP (transposed layout, project-then-gather) -----------------
    p_both = dot(w_ref[0:2 * H, 0:DA], na)             # (2H, N) = [p_src; p_tgt]
    h = dot(p_both[0:H, :], gs) + dot(p_both[H:2 * H, :], gt) + vcol(0)  # (H, E)
    h = jnp.maximum(h, 0.0)
    h = dot(w_ref[2 * H:3 * H, 0:H], h) + vcol(1)      # (H, E)
    h = layer_norm(h, vcol(2), vcol(3))
    h = jnp.maximum(h, 0.0)
    e_attr = dot(w_ref[3 * H:4 * H, 0:H], h) + vcol(4)  # (H, E)  edge_attr^T

    # ---- unsorted_segment_sum(edge_attr, row): (H,E) x (E,N) -> (H,N) ------
    agg = dot(e_attr, seg)                              # (H, N)

    # ---- node MLP: one fused first layer over cat([states, action, agg]) ---
    xin = jnp.concatenate([na, agg], axis=0)            # (DAH, N), aligned concat
    g = dot(w_ref[4 * H:5 * H, 0:DAH], xin) + vcol(5)   # (H, N)
    g = jnp.maximum(g, 0.0)
    g = dot(w_ref[5 * H:6 * H, 0:H], g) + vcol(6)
    g = layer_norm(g, vcol(7), vcol(8))
    g = jnp.maximum(g, 0.0)
    out = dot(w_ref[6 * H:6 * H + D, 0:H], g) + vcol(9, D)   # (D, N)

    out_ref[...] = out.astype(out_ref.dtype)


# ------------------------------- wrapper ----------------------------------
def _full_spec(shape):
    return pl.BlockSpec(shape, lambda i: (0,) * len(shape))


def transition_gnn_forward(states, action, packed):
    """states (B,K,D), action (B,K,A) f32 -> (B,K,D) f32.  `packed` from pack_params."""
    na = jnp.concatenate([states.reshape(N, D), action.reshape(N, A)], axis=1).T
    out_t = pl.pallas_call(
        transition_gnn_kernel,
        out_shape=jax.ShapeDtypeStruct((D, N), jnp.float32),
        grid_spec=pltpu.PrefetchScalarGridSpec(
            num_scalar_prefetch=0,
            grid=(1,),
            in_specs=[
                _full_spec((DA, N)),            # states/action, pre-transposed
                _full_spec((2, E)),             # [row; col] int32
                _full_spec((E, 1)),             # row int32 (sublane-oriented)
                _full_spec((6 * H + D, DAH)),   # packed transposed weights
                _full_spec((H, 10)),            # packed biases / LN params
            ],
            out_specs=_full_spec((D, N)),
        ),
        compiler_params=pltpu.CompilerParams(
            dimension_semantics=("arbitrary",)),
    )(na, packed["eidx"], packed["ridx"], packed["w"], packed["v"])
    return out_t.T.reshape(B, K, D)


# -------------------- edge list + parameter packing ------------------------
def _edge_index():
    # fully connected graph minus self-loops, row-major (matches torch nonzero)
    pairs = [(i, j) for i in range(K) for j in range(K) if i != j]
    row_b = np.array([p[0] for p in pairs], np.int32)
    col_b = np.array([p[1] for p in pairs], np.int32)
    offs = np.repeat(np.arange(B, dtype=np.int32) * K, EPB)
    return np.tile(row_b, B) + offs, np.tile(col_b, B) + offs


def pack_params(p):
    """One-time packing of logical params into the kernel's slab layout."""
    def blk(mat, rows=H):                 # pad a (r, c) block to (rows, DAH)
        r, c = mat.shape
        return jnp.pad(mat, ((0, rows - r), (0, DAH - c)))

    w = jnp.concatenate([
        blk(p["we1"][:D].T),              # 0: edge L1, src half  (action cols zero)
        blk(p["we1"][D:].T),              # 1: edge L1, tgt half
        blk(p["we2"].T),                  # 2: edge L2
        blk(p["we3"].T),                  # 3: edge L3
        blk(p["wn1"].T),                  # 4: node L1 (states|act|agg fused)
        blk(p["wn2"].T),                  # 5: node L2
        blk(p["wn3"].T, rows=D),          # 6: node L3 (D rows)
    ], axis=0)                            # (6H + D, DAH)

    v = jnp.concatenate([
        p["be1"], p["be2"], p["ge"], p["bge"], p["be3"],
        p["bn1"], p["bn2"], p["gn"], p["bgn"],
        jnp.pad(p["bn3"], ((0, 0), (0, H - D))),
    ], axis=0).T                          # (H, 10)

    row, col = _edge_index()
    eidx = jnp.asarray(np.stack([row, col], axis=0), jnp.int32)   # (2, E)
    ridx = jnp.asarray(row.reshape(E, 1), jnp.int32)              # (E, 1)
    return {"w": w, "v": v, "eidx": eidx, "ridx": ridx}


# ------------------------- deterministic parameters ------------------------
def init_params(key):
    ks = jax.random.split(key, 16)
    s = 0.1
    rn = lambda k, shp: s * jax.random.normal(k, shp, jnp.float32)
    return {
        # edge_mlp: Linear(2D,H) ReLU Linear(H,H) LN(H) ReLU Linear(H,H)
        "we1": rn(ks[0], (2 * D, H)), "be1": 0.1 * rn(ks[1], (1, H)),
        "we2": rn(ks[2], (H, H)),     "be2": 0.1 * rn(ks[3], (1, H)),
        "ge": 1.0 + rn(ks[4], (1, H)), "bge": 0.1 * rn(ks[5], (1, H)),
        "we3": rn(ks[6], (H, H)),     "be3": 0.1 * rn(ks[7], (1, H)),
        # node_mlp: Linear(D+A+H,H) ReLU Linear(H,H) LN(H) ReLU Linear(H,D)
        "wn1": rn(ks[8], (D + A + H, H)), "bn1": 0.1 * rn(ks[9], (1, H)),
        "wn2": rn(ks[10], (H, H)),    "bn2": 0.1 * rn(ks[11], (1, H)),
        "gn": 1.0 + rn(ks[12], (1, H)), "bgn": 0.1 * rn(ks[13], (1, H)),
        "wn3": rn(ks[14], (H, D)),    "bn3": 0.1 * rn(ks[15], (1, D)),
    }


# ----------------------------- pure-JAX reference --------------------------
def _layer_norm_rows(x, gamma, beta):
    mu = jnp.mean(x, axis=-1, keepdims=True)
    var = jnp.mean((x - mu) ** 2, axis=-1, keepdims=True)
    return (x - mu) * jax.lax.rsqrt(var + LN_EPS) * gamma + beta


def reference_forward(states, action, p):
    node = states.reshape(N, D)
    row, col = _edge_index()
    x = jnp.concatenate([node[row], node[col]], axis=1)
    h = jnp.maximum(x @ p["we1"] + p["be1"], 0.0)
    h = h @ p["we2"] + p["be2"]
    h = _layer_norm_rows(h, p["ge"], p["bge"])
    h = jnp.maximum(h, 0.0)
    e = h @ p["we3"] + p["be3"]
    agg = jax.ops.segment_sum(e, jnp.asarray(row), num_segments=N)
    nin = jnp.concatenate([node, action.reshape(N, A), agg], axis=1)
    g = jnp.maximum(nin @ p["wn1"] + p["bn1"], 0.0)
    g = g @ p["wn2"] + p["bn2"]
    g = _layer_norm_rows(g, p["gn"], p["bgn"])
    g = jnp.maximum(g, 0.0)
    out = g @ p["wn3"] + p["bn3"]
    return out.reshape(B, K, D)


if __name__ == "__main__":
    key = jax.random.PRNGKey(0)
    k_s, k_a, k_p = jax.random.split(key, 3)
    states = jax.random.normal(k_s, (B, K, D), jnp.float32)
    action = jax.random.normal(k_a, (B, K, A), jnp.float32)
    params = init_params(k_p)
    packed = pack_params(params)   # one-time packing, outside the hot path

    fwd = jax.jit(transition_gnn_forward)
    out = jax.block_until_ready(fwd(states, action, packed))

    ref = jax.block_until_ready(reference_forward(states, action, params))
    np.testing.assert_allclose(np.asarray(out), np.asarray(ref),
                               rtol=2e-4, atol=2e-4)
    print("KERNEL_OK")
</pallas_src>

<mosaic_0001>
module attributes {stable_mosaic.version = 11 : i64} {
  func.func @transition_gnn_kernel(%arg0: i32, %arg1: memref<8x80xf32, #tpu.memory_space<vmem>>, %arg2: memref<2x320xi32, #tpu.memory_space<vmem>>, %arg3: memref<320x1xi32, #tpu.memory_space<vmem>>, %arg4: memref<196x40xf32, #tpu.memory_space<vmem>>, %arg5: memref<32x10xf32, #tpu.memory_space<vmem>>, %arg6: memref<4x80xf32, #tpu.memory_space<vmem>>) attributes {dimension_semantics = [#tpu.dimension_semantics<arbitrary>], iteration_bounds = array<i64: 1>, scalar_prefetch = 0 : i64, scratch_operands = 0 : i64, tpu.core_type = #tpu.core_type<tc>, window_params = [{pipeline_mode = #tpu.pipeline_mode<synchronous>, transform_indices = @transform_0, window_bounds = array<i64: 8, 80>}, {pipeline_mode = #tpu.pipeline_mode<synchronous>, transform_indices = @transform_1, window_bounds = array<i64: 2, 320>}, {pipeline_mode = #tpu.pipeline_mode<synchronous>, transform_indices = @transform_2, window_bounds = array<i64: 320, 1>}, {pipeline_mode = #tpu.pipeline_mode<synchronous>, transform_indices = @transform_3, window_bounds = array<i64: 196, 40>}, {pipeline_mode = #tpu.pipeline_mode<synchronous>, transform_indices = @transform_4, window_bounds = array<i64: 32, 10>}, {pipeline_mode = #tpu.pipeline_mode<synchronous>, transform_indices = @transform_5, window_bounds = array<i64: 4, 80>}]} {
    %c0 = arith.constant 0 : index
    %c0_0 = arith.constant 0 : index
    %0 = vector.load %arg1[%c0, %c0_0] : memref<8x80xf32, #tpu.memory_space<vmem>>, vector<8x80xf32>
    %c0_1 = arith.constant 0 : index
    %c0_2 = arith.constant 0 : index
    %1 = vector.load %arg2[%c0_1, %c0_2] : memref<2x320xi32, #tpu.memory_space<vmem>>, vector<2x320xi32>
    %c0_3 = arith.constant 0 : index
    %c0_4 = arith.constant 0 : index
    %2 = vector.load %arg3[%c0_3, %c0_4] : memref<320x1xi32, #tpu.memory_space<vmem>>, vector<320x1xi32>
    %3 = tpu.iota {dimensions = array<i32: 0>} : vector<80x320xi32>
    %4 = vector.extract_strided_slice %1 {offsets = [0, 0], sizes = [1, 320], strides = [1, 1]} : vector<2x320xi32> to vector<1x320xi32>
    %5 = vector.broadcast %4 : vector<1x320xi32> to vector<80x320xi32>
    %6 = arith.cmpi eq, %3, %5 : vector<80x320xi32>
    %7 = arith.extui %6 : vector<80x320xi1> to vector<80x320xi32>
    %8 = arith.sitofp %7 : vector<80x320xi32> to vector<80x320xf32>
    %9 = vector.extract_strided_slice %1 {offsets = [1, 0], sizes = [1, 320], strides = [1, 1]} : vector<2x320xi32> to vector<1x320xi32>
    %10 = vector.broadcast %9 : vector<1x320xi32> to vector<80x320xi32>
    %11 = arith.cmpi eq, %3, %10 : vector<80x320xi32>
    %12 = arith.extui %11 : vector<80x320xi1> to vector<80x320xi32>
    %13 = arith.sitofp %12 : vector<80x320xi32> to vector<80x320xf32>
    %14 = tpu.iota {dimensions = array<i32: 1>} : vector<320x80xi32>
    %15 = vector.broadcast %2 : vector<320x1xi32> to vector<320x80xi32>
    %16 = arith.cmpi eq, %14, %15 : vector<320x80xi32>
    %17 = arith.extui %16 : vector<320x80xi1> to vector<320x80xi32>
    %18 = arith.sitofp %17 : vector<320x80xi32> to vector<320x80xf32>
    %c0_5 = arith.constant 0 : index
    %c0_6 = arith.constant 0 : index
    %19 = vector.load %arg4[%c0_5, %c0_6] : memref<196x40xf32, #tpu.memory_space<vmem>>, vector<64x8xf32>
    %cst = arith.constant dense<0.000000e+00> : vector<64x80xf32>
    %20 = tpu.matmul %19, %0, %cst {dimension_numbers = #tpu.dot_dimension_numbers<[1], [0], [0], [1], [0, 0, 1, 1], [], []>} : vector<64x8xf32>, vector<8x80xf32>, vector<64x80xf32> -> vector<64x80xf32>
    %21 = vector.extract_strided_slice %20 {offsets = [0, 0], sizes = [32, 80], strides = [1, 1]} : vector<64x80xf32> to vector<32x80xf32>
    %cst_7 = arith.constant dense<0.000000e+00> : vector<32x320xf32>
    %22 = tpu.matmul %21, %8, %cst_7 {dimension_numbers = #tpu.dot_dimension_numbers<[1], [0], [0], [1], [0, 0, 1, 1], [], []>} : vector<32x80xf32>, vector<80x320xf32>, vector<32x320xf32> -> vector<32x320xf32>
    %23 = vector.extract_strided_slice %20 {offsets = [32, 0], sizes = [32, 80], strides = [1, 1]} : vector<64x80xf32> to vector<32x80xf32>
    %cst_8 = arith.constant dense<0.000000e+00> : vector<32x320xf32>
    %24 = tpu.matmul %23, %13, %cst_8 {dimension_numbers = #tpu.dot_dimension_numbers<[1], [0], [0], [1], [0, 0, 1, 1], [], []>} : vector<32x80xf32>, vector<80x320xf32>, vector<32x320xf32> -> vector<32x320xf32>
    %25 = arith.addf %22, %24 : vector<32x320xf32>
    %c0_9 = arith.constant 0 : index
    %c0_10 = arith.constant 0 : index
    %26 = vector.load %arg5[%c0_9, %c0_10] : memref<32x10xf32, #tpu.memory_space<vmem>>, vector<32x1xf32>
    %27 = vector.broadcast %26 : vector<32x1xf32> to vector<32x320xf32>
    %28 = arith.addf %25, %27 : vector<32x320xf32>
    %cst_11 = arith.constant 0.000000e+00 : f32
    %29 = vector.broadcast %cst_11 : f32 to vector<32x320xf32>
    %30 = arith.maximumf %28, %29 : vector<32x320xf32>
    %c64 = arith.constant 64 : index
    %c0_12 = arith.constant 0 : index
    %31 = vector.load %arg4[%c64, %c0_12] : memref<196x40xf32, #tpu.memory_space<vmem>>, vector<32x32xf32>
    %cst_13 = arith.constant dense<0.000000e+00> : vector<32x320xf32>
    %32 = tpu.matmul %31, %30, %cst_13 {dimension_numbers = #tpu.dot_dimension_numbers<[1], [0], [0], [1], [0, 0, 1, 1], [], []>} : vector<32x32xf32>, vector<32x320xf32>, vector<32x320xf32> -> vector<32x320xf32>
    %c0_14 = arith.constant 0 : index
    %c1 = arith.constant 1 : index
    %33 = vector.load %arg5[%c0_14, %c1] : memref<32x10xf32, #tpu.memory_space<vmem>>, vector<32x1xf32>
    %34 = vector.broadcast %33 : vector<32x1xf32> to vector<32x320xf32>
    %35 = arith.addf %32, %34 : vector<32x320xf32>
    %c0_15 = arith.constant 0 : index
    %c2 = arith.constant 2 : index
    %36 = vector.load %arg5[%c0_15, %c2] : memref<32x10xf32, #tpu.memory_space<vmem>>, vector<32x1xf32>
    %c0_16 = arith.constant 0 : index
    %c3 = arith.constant 3 : index
    %37 = vector.load %arg5[%c0_16, %c3] : memref<32x10xf32, #tpu.memory_space<vmem>>, vector<32x1xf32>
    %cst_17 = arith.constant dense<0.000000e+00> : vector<320xf32>
    %38 = vector.multi_reduction <add>, %35, %cst_17 [0] : vector<32x320xf32> to vector<320xf32>
    %39 = vector.shape_cast %38 : vector<320xf32> to vector<1x320xf32>
    %cst_18 = arith.constant 3.200000e+01 : f32
    %40 = vector.broadcast %cst_18 : f32 to vector<1x320xf32>
    %41 = arith.divf %39, %40 : vector<1x320xf32>
    %42 = vector.broadcast %41 : vector<1x320xf32> to vector<32x320xf32>
    %43 = arith.subf %35, %42 : vector<32x320xf32>
    %44 = arith.mulf %43, %43 : vector<32x320xf32>
    %cst_19 = arith.constant dense<0.000000e+00> : vector<320xf32>
    %45 = vector.multi_reduction <add>, %44, %cst_19 [0] : vector<32x320xf32> to vector<320xf32>
    %46 = vector.shape_cast %45 : vector<320xf32> to vector<1x320xf32>
    %cst_20 = arith.constant 3.200000e+01 : f32
    %47 = vector.broadcast %cst_20 : f32 to vector<1x320xf32>
    %48 = arith.divf %46, %47 : vector<1x320xf32>
    %cst_21 = arith.constant 9.99999974E-6 : f32
    %49 = vector.broadcast %cst_21 : f32 to vector<1x320xf32>
    %50 = arith.addf %48, %49 : vector<1x320xf32>
    %51 = math.rsqrt %50 : vector<1x320xf32>
    %52 = vector.broadcast %36 : vector<32x1xf32> to vector<32x320xf32>
    %53 = vector.broadcast %51 : vector<1x320xf32> to vector<32x320xf32>
    %54 = arith.mulf %52, %53 : vector<32x320xf32>
    %55 = arith.mulf %43, %54 : vector<32x320xf32>
    %56 = vector.broadcast %37 : vector<32x1xf32> to vector<32x320xf32>
    %57 = arith.addf %55, %56 : vector<32x320xf32>
    %cst_22 = arith.constant 0.000000e+00 : f32
    %58 = vector.broadcast %cst_22 : f32 to vector<32x320xf32>
    %59 = arith.maximumf %57, %58 : vector<32x320xf32>
    %c96 = arith.constant 96 : index
    %c0_23 = arith.constant 0 : index
    %60 = vector.load %arg4[%c96, %c0_23] : memref<196x40xf32, #tpu.memory_space<vmem>>, vector<32x32xf32>
    %cst_24 = arith.constant dense<0.000000e+00> : vector<32x320xf32>
    %61 = tpu.matmul %60, %59, %cst_24 {dimension_numbers = #tpu.dot_dimension_numbers<[1], [0], [0], [1], [0, 0, 1, 1], [], []>} : vector<32x32xf32>, vector<32x320xf32>, vector<32x320xf32> -> vector<32x320xf32>
    %c0_25 = arith.constant 0 : index
    %c4 = arith.constant 4 : index
    %62 = vector.load %arg5[%c0_25, %c4] : memref<32x10xf32, #tpu.memory_space<vmem>>, vector<32x1xf32>
    %63 = vector.broadcast %62 : vector<32x1xf32> to vector<32x320xf32>
    %64 = arith.addf %61, %63 : vector<32x320xf32>
    %cst_26 = arith.constant dense<0.000000e+00> : vector<32x80xf32>
    %65 = tpu.matmul %64, %18, %cst_26 {dimension_numbers = #tpu.dot_dimension_numbers<[1], [0], [0], [1], [0, 0, 1, 1], [], []>} : vector<32x320xf32>, vector<320x80xf32>, vector<32x80xf32> -> vector<32x80xf32>
    %66 = tpu.concatenate %0, %65 in 0 : vector<8x80xf32>, vector<32x80xf32> -> vector<40x80xf32>
    %c128 = arith.constant 128 : index
    %c0_27 = arith.constant 0 : index
    %67 = vector.load %arg4[%c128, %c0_27] : memref<196x40xf32, #tpu.memory_space<vmem>>, vector<32x40xf32>
    %cst_28 = arith.constant dense<0.000000e+00> : vector<32x80xf32>
    %68 = tpu.matmul %67, %66, %cst_28 {dimension_numbers = #tpu.dot_dimension_numbers<[1], [0], [0], [1], [0, 0, 1, 1], [], []>} : vector<32x40xf32>, vector<40x80xf32>, vector<32x80xf32> -> vector<32x80xf32>
    %c0_29 = arith.constant 0 : index
    %c5 = arith.constant 5 : index
    %69 = vector.load %arg5[%c0_29, %c5] : memref<32x10xf32, #tpu.memory_space<vmem>>, vector<32x1xf32>
    %70 = vector.broadcast %69 : vector<32x1xf32> to vector<32x80xf32>
    %71 = arith.addf %68, %70 : vector<32x80xf32>
    %cst_30 = arith.constant 0.000000e+00 : f32
    %72 = vector.broadcast %cst_30 : f32 to vector<32x80xf32>
    %73 = arith.maximumf %71, %72 : vector<32x80xf32>
    %c160 = arith.constant 160 : index
    %c0_31 = arith.constant 0 : index
    %74 = vector.load %arg4[%c160, %c0_31] : memref<196x40xf32, #tpu.memory_space<vmem>>, vector<32x32xf32>
    %cst_32 = arith.constant dense<0.000000e+00> : vector<32x80xf32>
    %75 = tpu.matmul %74, %73, %cst_32 {dimension_numbers = #tpu.dot_dimension_numbers<[1], [0], [0], [1], [0, 0, 1, 1], [], []>} : vector<32x32xf32>, vector<32x80xf32>, vector<32x80xf32> -> vector<32x80xf32>
    %c0_33 = arith.constant 0 : index
    %c6 = arith.constant 6 : index
    %76 = vector.load %arg5[%c0_33, %c6] : memref<32x10xf32, #tpu.memory_space<vmem>>, vector<32x1xf32>
    %77 = vector.broadcast %76 : vector<32x1xf32> to vector<32x80xf32>
    %78 = arith.addf %75, %77 : vector<32x80xf32>
    %c0_34 = arith.constant 0 : index
    %c7 = arith.constant 7 : index
    %79 = vector.load %arg5[%c0_34, %c7] : memref<32x10xf32, #tpu.memory_space<vmem>>, vector<32x1xf32>
    %c0_35 = arith.constant 0 : index
    %c8 = arith.constant 8 : index
    %80 = vector.load %arg5[%c0_35, %c8] : memref<32x10xf32, #tpu.memory_space<vmem>>, vector<32x1xf32>
    %cst_36 = arith.constant dense<0.000000e+00> : vector<80xf32>
    %81 = vector.multi_reduction <add>, %78, %cst_36 [0] : vector<32x80xf32> to vector<80xf32>
    %82 = vector.shape_cast %81 : vector<80xf32> to vector<1x80xf32>
    %cst_37 = arith.constant 3.200000e+01 : f32
    %83 = vector.broadcast %cst_37 : f32 to vector<1x80xf32>
    %84 = arith.divf %82, %83 : vector<1x80xf32>
    %85 = vector.broadcast %84 : vector<1x80xf32> to vector<32x80xf32>
    %86 = arith.subf %78, %85 : vector<32x80xf32>
    %87 = arith.mulf %86, %86 : vector<32x80xf32>
    %cst_38 = arith.constant dense<0.000000e+00> : vector<80xf32>
    %88 = vector.multi_reduction <add>, %87, %cst_38 [0] : vector<32x80xf32> to vector<80xf32>
    %89 = vector.shape_cast %88 : vector<80xf32> to vector<1x80xf32>
    %cst_39 = arith.constant 3.200000e+01 : f32
    %90 = vector.broadcast %cst_39 : f32 to vector<1x80xf32>
    %91 = arith.divf %89, %90 : vector<1x80xf32>
    %cst_40 = arith.constant 9.99999974E-6 : f32
    %92 = vector.broadcast %cst_40 : f32 to vector<1x80xf32>
    %93 = arith.addf %91, %92 : vector<1x80xf32>
    %94 = math.rsqrt %93 : vector<1x80xf32>
    %95 = vector.broadcast %79 : vector<32x1xf32> to vector<32x80xf32>
    %96 = vector.broadcast %94 : vector<1x80xf32> to vector<32x80xf32>
    %97 = arith.mulf %95, %96 : vector<32x80xf32>
    %98 = arith.mulf %86, %97 : vector<32x80xf32>
    %99 = vector.broadcast %80 : vector<32x1xf32> to vector<32x80xf32>
    %100 = arith.addf %98, %99 : vector<32x80xf32>
    %cst_41 = arith.constant 0.000000e+00 : f32
    %101 = vector.broadcast %cst_41 : f32 to vector<32x80xf32>
    %102 = arith.maximumf %100, %101 : vector<32x80xf32>
    %c192 = arith.constant 192 : index
    %c0_42 = arith.constant 0 : index
    %103 = vector.load %arg4[%c192, %c0_42] : memref<196x40xf32, #tpu.memory_space<vmem>>, vector<4x32xf32>
    %cst_43 = arith.constant dense<0.000000e+00> : vector<4x80xf32>
    %104 = tpu.matmul %103, %102, %cst_43 {dimension_numbers = #tpu.dot_dimension_numbers<[1], [0], [0], [1], [0, 0, 1, 1], [], []>} : vector<4x32xf32>, vector<32x80xf32>, vector<4x80xf32> -> vector<4x80xf32>
    %c0_44 = arith.constant 0 : index
    %c9 = arith.constant 9 : index
    %105 = vector.load %arg5[%c0_44, %c9] : memref<32x10xf32, #tpu.memory_space<vmem>>, vector<4x1xf32>
    %106 = vector.broadcast %105 : vector<4x1xf32> to vector<4x80xf32>
    %107 = arith.addf %104, %106 : vector<4x80xf32>
    %c0_45 = arith.constant 0 : index
    %c0_46 = arith.constant 0 : index
    %108 = vector.load %arg6[%c0_45, %c0_46] : memref<4x80xf32, #tpu.memory_space<vmem>>, vector<4x80xf32>
    tpu.vector_store %arg6[%c0_45, %c0_46], %107 {strides = array<i32>} : memref<4x80xf32, #tpu.memory_space<vmem>>, vector<4x80xf32>,
    return
  }
  func.func @transform_0(%arg0: i32) -> (i32, i32) {
    %c0_i32 = arith.constant 0 : i32
    %c0_i32_0 = arith.constant 0 : i32
    %c0_i32_1 = arith.constant 0 : i32
    return %c0_i32, %c0_i32_0 : i32, i32
  }
  func.func @transform_1(%arg0: i32) -> (i32, i32) {
    %c0_i32 = arith.constant 0 : i32
    %c0_i32_0 = arith.constant 0 : i32
    %c0_i32_1 = arith.constant 0 : i32
    return %c0_i32, %c0_i32_0 : i32, i32
  }
  func.func @transform_2(%arg0: i32) -> (i32, i32) {
    %c0_i32 = arith.constant 0 : i32
    %c0_i32_0 = arith.constant 0 : i32
    %c0_i32_1 = arith.constant 0 : i32
    return %c0_i32, %c0_i32_0 : i32, i32
  }
  func.func @transform_3(%arg0: i32) -> (i32, i32) {
    %c0_i32 = arith.constant 0 : i32
    %c0_i32_0 = arith.constant 0 : i32
    %c0_i32_1 = arith.constant 0 : i32
    return %c0_i32, %c0_i32_0 : i32, i32
  }
  func.func @transform_4(%arg0: i32) -> (i32, i32) {
    %c0_i32 = arith.constant 0 : i32
    %c0_i32_0 = arith.constant 0 : i32
    %c0_i32_1 = arith.constant 0 : i32
    return %c0_i32, %c0_i32_0 : i32, i32
  }
  func.func @transform_5(%arg0: i32) -> (i32, i32) {
    %c0_i32 = arith.constant 0 : i32
    %c0_i32_0 = arith.constant 0 : i32
    %c0_i32_1 = arith.constant 0 : i32
    return %c0_i32, %c0_i32_0 : i32, i32
  }
}

</mosaic_0001>

<llo_original>
// kernel: transition_gnn_forward.1
$region0: #{transition_gnn_forward.1}
  #allocation0 [shape = 'u32[]', space=smem, size = 0x4, offset = 0x4, fixed_abs, tag = 'smem constant byte address 0x4 - core index']
  #allocation1 [shape = 'u32[72,128]{1,0:T(1,128)}', space=vmem, size = 0x9000, scoped, tag = 'internal scratch']
  %s0 = inlined_call_operand.vmem [shape: f32[8,80], index: 0, kind: input, shape index: {}]
  %s1 = inlined_call_operand.vmem [shape: s32[2,320], index: 1, kind: input, shape index: {}]
  %s2 = inlined_call_operand.vmem [shape: s32[320,1], index: 2, kind: input, shape index: {}]
  %s3 = inlined_call_operand.vmem [shape: f32[196,40], index: 3, kind: input, shape index: {}]
  %s4 = inlined_call_operand.vmem [shape: f32[32,10], index: 4, kind: input, shape index: {}]
  %s5 = inlined_call_operand.vmem [shape: f32[4,80], index: 5, kind: output, shape index: {}]
  %s6 = sld [smem:[#allocation0]]
  $region30: #{transition_gnn_forward.1} parent=0
    _
  %s8 = ssub.s32 1, %s6
  %s9 = scalar_select 0, %s8, %s6
  // Predicated region
  $region2: #{transition_gnn_forward.1} parent=0 // pred_check
    _
  $region3: #{transition_gnn_forward.1} parent=0 // pred_check_branch
    %11 = sbr.rel (0) target = $region5
  $region4: #{transition_gnn_forward.1} parent=0 // pred_region
    _
  $region5: #{transition_gnn_forward.1} parent=0 // pred_fallthru
    _
  // Predicated region
  $region6: #{transition_gnn_forward.1} parent=0 // pred_check
    _
  $region7: #{transition_gnn_forward.1} parent=0 // pred_check_branch
    %13 = sbr.rel (0) target = $region9
  $region8: #{transition_gnn_forward.1} parent=0 // pred_region
    _
  $region9: #{transition_gnn_forward.1} parent=0 // pred_fallthru
    _
  // Predicated region
  $region10: #{transition_gnn_forward.1} parent=0 // pred_check
    _
  $region11: #{transition_gnn_forward.1} parent=0 // pred_check_branch
    %15 = sbr.rel (0) target = $region13
  $region12: #{transition_gnn_forward.1} parent=0 // pred_region
    _
  $region13: #{transition_gnn_forward.1} parent=0 // pred_fallthru
    _
  // Predicated region
  $region14: #{transition_gnn_forward.1} parent=0 // pred_check
    _
  $region15: #{transition_gnn_forward.1} parent=0 // pred_check_branch
    %17 = sbr.rel (0) target = $region17
  $region16: #{transition_gnn_forward.1} parent=0 // pred_region
    _
  $region17: #{transition_gnn_forward.1} parent=0 // pred_fallthru
    _
  // Predicated region
  $region18: #{transition_gnn_forward.1} parent=0 // pred_check
    _
  $region19: #{transition_gnn_forward.1} parent=0 // pred_check_branch
    %19 = sbr.rel (0) target = $region21
  $region20: #{transition_gnn_forward.1} parent=0 // pred_region
    _
  $region21: #{transition_gnn_forward.1} parent=0 // pred_fallthru
    _
  %v20 = vld [vmem:[%s0] sm:$0xff]
  %v21 = vld [vmem:[%s1] sm:$0x3f]
  %v22 = vld [vmem:[%s2] sm:$0xff]
  %v23 = vld [vmem:[%s2 + $0x8] sm:$0xff]
  %v24 = vld [vmem:[%s2 + $0x10] sm:$0xff]
  %v25 = vld [vmem:[%s2 + $0x18] sm:$0xff]
  %v26 = vld [vmem:[%s2 + $0x20] sm:$0xff]
  %v27 = vld [vmem:[%s2 + $0x28] sm:$0xff]
  %v28 = vld [vmem:[%s2 + $0x30] sm:$0xff]
  %v29 = vld [vmem:[%s2 + $0x38] sm:$0xff]
  %v30 = vld [vmem:[%s2 + $0x40] sm:$0xff]
  %v31 = vld [vmem:[%s2 + $0x48] sm:$0xff]
  %v32 = vld [vmem:[%s2 + $0x50] sm:$0xff]
  %v33 = vld [vmem:[%s2 + $0x58] sm:$0xff]
  %v34 = vld [vmem:[%s2 + $0x60] sm:$0xff]
  %v35 = vld [vmem:[%s2 + $0x68] sm:$0xff]
  %v36 = vld [vmem:[%s2 + $0x70] sm:$0xff]
  %v37 = vld [vmem:[%s2 + $0x78] sm:$0xff]
  %v38 = vld [vmem:[%s2 + $0x80] sm:$0xff]
  %v39 = vld [vmem:[%s2 + $0x88] sm:$0xff]
  %v40 = vld [vmem:[%s2 + $0x90] sm:$0xff]
  %v41 = vld [vmem:[%s2 + $0x98] sm:$0xff]
  %v42 = vld [vmem:[%s2 + $0xa0] sm:$0xff]
  %v43 = vld [vmem:[%s2 + $0xa8] sm:$0xff]
  %v44 = vld [vmem:[%s2 + $0xb0] sm:$0xff]
  %v45 = vld [vmem:[%s2 + $0xb8] sm:$0xff]
  %v46 = vld [vmem:[%s2 + $0xc0] sm:$0xff]
  %v47 = vld [vmem:[%s2 + $0xc8] sm:$0xff]
  %v48 = vld [vmem:[%s2 + $0xd0] sm:$0xff]
  %v49 = vld [vmem:[%s2 + $0xd8] sm:$0xff]
  %v50 = vld [vmem:[%s2 + $0xe0] sm:$0xff]
  %v51 = vld [vmem:[%s2 + $0xe8] sm:$0xff]
  %v52 = vld [vmem:[%s2 + $0xf0] sm:$0xff]
  %v53 = vld [vmem:[%s2 + $0xf8] sm:$0xff]
  %v54 = vld [vmem:[%s2 + $0x100] sm:$0xff]
  %v55 = vld [vmem:[%s2 + $0x108] sm:$0xff]
  %v56 = vld [vmem:[%s2 + $0x110] sm:$0xff]
  %v57 = vld [vmem:[%s2 + $0x118] sm:$0xff]
  %v58 = vld [vmem:[%s2 + $0x120] sm:$0xff]
  %v59 = vld [vmem:[%s2 + $0x128] sm:$0xff]
  %v60 = vld [vmem:[%s2 + $0x130] sm:$0xff]
  %v61 = vld [vmem:[%s2 + $0x138] sm:$0xff]
  %v62 = vlaneseq
  %v63 = vshrl.u32 %v62, 7
  %v64 = vadd.s32 %v63, 8
  %v65 = vadd.s32 %v63, 16
  %v66 = vadd.s32 %v63, 24
  %v67 = vadd.s32 %v63, 32
  %v68 = vadd.s32 %v63, 40
  %v69 = vadd.s32 %v63, 48
  %v70 = vadd.s32 %v63, 56
  %v71 = vadd.s32 %v63, 64
  %v72 = vadd.s32 %v63, 72
  %v73 = vperm.slane %v21, 0
  %v74 = vperm.slane %v21, 2
  %v75 = vperm.slane %v21, 4
  %v76 = vperm.slane %v73, 0
  %v77 = vperm.slane %v74, 0
  %v78 = vperm.slane %v75, 0
  %vm79 = vcmp.eq.s32.totalorder %v63, %v76
  %vm80 = vcmp.eq.s32.totalorder %v63, %v77
  %vm81 = vcmp.eq.s32.totalorder %v63, %v78
  %vm82 = vcmp.eq.s32.totalorder %v64, %v76
  %vm83 = vcmp.eq.s32.totalorder %v64, %v77
  %vm84 = vcmp.eq.s32.totalorder %v64, %v78
  %vm85 = vcmp.eq.s32.totalorder %v65, %v76
  %vm86 = vcmp.eq.s32.totalorder %v65, %v77
  %vm87 = vcmp.eq.s32.totalorder %v65, %v78
  %vm88 = vcmp.eq.s32.totalorder %v66, %v76
  %vm89 = vcmp.eq.s32.totalorder %v66, %v77
  %vm90 = vcmp.eq.s32.totalorder %v66, %v78
  %vm91 = vcmp.eq.s32.totalorder %v67, %v76
  %vm92 = vcmp.eq.s32.totalorder %v67, %v77
  %vm93 = vcmp.eq.s32.totalorder %v67, %v78
  %vm94 = vcmp.eq.s32.totalorder %v68, %v76
  %vm95 = vcmp.eq.s32.totalorder %v68, %v77
  %vm96 = vcmp.eq.s32.totalorder %v68, %v78
  %vm97 = vcmp.eq.s32.totalorder %v69, %v76
  %vm98 = vcmp.eq.s32.totalorder %v69, %v77
  %vm99 = vcmp.eq.s32.totalorder %v69, %v78
  %vm100 = vcmp.eq.s32.totalorder %v70, %v76
  %vm101 = vcmp.eq.s32.totalorder %v70, %v77
  %vm102 = vcmp.eq.s32.totalorder %v70, %v78
  %vm103 = vcmp.eq.s32.totalorder %v71, %v76
  %vm104 = vcmp.eq.s32.totalorder %v71, %v77
  %vm105 = vcmp.eq.s32.totalorder %v71, %v78
  %vm106 = vcmp.eq.s32.totalorder %v72, %v76
  %vm107 = vcmp.eq.s32.totalorder %v72, %v77
  %vm108 = vcmp.eq.s32.totalorder %v72, %v78
  %v109 = vsel %vm79, 1, 0
  %v110 = vsel %vm80, 1, 0
  %v111 = vsel %vm81, 1, 0
  %v112 = vsel %vm82, 1, 0
  %v113 = vsel %vm83, 1, 0
  %v114 = vsel %vm84, 1, 0
  %v115 = vsel %vm85, 1, 0
  %v116 = vsel %vm86, 1, 0
  %v117 = vsel %vm87, 1, 0
  %v118 = vsel %vm88, 1, 0
  %v119 = vsel %vm89, 1, 0
  %v120 = vsel %vm90, 1, 0
  %v121 = vsel %vm91, 1, 0
  %v122 = vsel %vm92, 1, 0
  %v123 = vsel %vm93, 1, 0
  %v124 = vsel %vm94, 1, 0
  %v125 = vsel %vm95, 1, 0
  %v126 = vsel %vm96, 1, 0
  %v127 = vsel %vm97, 1, 0
  %v128 = vsel %vm98, 1, 0
  %v129 = vsel %vm99, 1, 0
  %v130 = vsel %vm100, 1, 0
  %v131 = vsel %vm101, 1, 0
  %v132 = vsel %vm102, 1, 0
  %v133 = vsel %vm103, 1, 0
  %v134 = vsel %vm104, 1, 0
  %v135 = vsel %vm105, 1, 0
  %v136 = vsel %vm106, 1, 0
  %v137 = vsel %vm107, 1, 0
  %v138 = vsel %vm108, 1, 0
  %v139 = vcvt.s32.f32 %v109
  %v140 = vcvt.s32.f32 %v110
  %v141 = vcvt.s32.f32 %v111
  %v142 = vcvt.s32.f32 %v112
  %v143 = vcvt.s32.f32 %v113
  %v144 = vcvt.s32.f32 %v114
  %v145 = vcvt.s32.f32 %v115
  %v146 = vcvt.s32.f32 %v116
  %v147 = vcvt.s32.f32 %v117
  %v148 = vcvt.s32.f32 %v118
  %v149 = vcvt.s32.f32 %v119
  %v150 = vcvt.s32.f32 %v120
  %v151 = vcvt.s32.f32 %v121
  %v152 = vcvt.s32.f32 %v122
  %v153 = vcvt.s32.f32 %v123
  %v154 = vcvt.s32.f32 %v124
  %v155 = vcvt.s32.f32 %v125
  %v156 = vcvt.s32.f32 %v126
  %v157 = vcvt.s32.f32 %v127
  %v158 = vcvt.s32.f32 %v128
  %v159 = vcvt.s32.f32 %v129
  %v160 = vcvt.s32.f32 %v130
  %v161 = vcvt.s32.f32 %v131
  %v162 = vcvt.s32.f32 %v132
  %v163 = vcvt.s32.f32 %v133
  %v164 = vcvt.s32.f32 %v134
  %v165 = vcvt.s32.f32 %v135
  %v166 = vcvt.s32.f32 %v136
  %v167 = vcvt.s32.f32 %v137
  %v168 = vcvt.s32.f32 %v138
  %v169 = vperm.slane %v21, 1
  %v170 = vperm.slane %v21, 3
  %v171 = vperm.slane %v21, 5
  %v172 = vperm.slane %v169, 1
  %v173 = vperm.slane %v170, 1
  %v174 = vperm.slane %v171, 1
  %vm175 = vcmp.eq.s32.totalorder %v63, %v172
  %vm176 = vcmp.eq.s32.totalorder %v63, %v173
  %vm177 = vcmp.eq.s32.totalorder %v63, %v174
  %vm178 = vcmp.eq.s32.totalorder %v64, %v172
  %vm179 = vcmp.eq.s32.totalorder %v64, %v173
  %vm180 = vcmp.eq.s32.totalorder %v64, %v174
  %vm181 = vcmp.eq.s32.totalorder %v65, %v172
  %vm182 = vcmp.eq.s32.totalorder %v65, %v173
  %vm183 = vcmp.eq.s32.totalorder %v65, %v174
  %vm184 = vcmp.eq.s32.totalorder %v66, %v172
  %vm185 = vcmp.eq.s32.totalorder %v66, %v173
  %vm186 = vcmp.eq.s32.totalorder %v66, %v174
  %vm187 = vcmp.eq.s32.totalorder %v67, %v172
  %vm188 = vcmp.eq.s32.totalorder %v67, %v173
  %vm189 = vcmp.eq.s32.totalorder %v67, %v174
  %vm190 = vcmp.eq.s32.totalorder %v68, %v172
  %vm191 = vcmp.eq.s32.totalorder %v68, %v173
  %vm192 = vcmp.eq.s32.totalorder %v68, %v174
  %vm193 = vcmp.eq.s32.totalorder %v69, %v172
  %vm194 = vcmp.eq.s32.totalorder %v69, %v173
  %vm195 = vcmp.eq.s32.totalorder %v69, %v174
  %vm196 = vcmp.eq.s32.totalorder %v70, %v172
  %vm197 = vcmp.eq.s32.totalorder %v70, %v173
  %vm198 = vcmp.eq.s32.totalorder %v70, %v174
  %vm199 = vcmp.eq.s32.totalorder %v71, %v172
  %vm200 = vcmp.eq.s32.totalorder %v71, %v173
  %vm201 = vcmp.eq.s32.totalorder %v71, %v174
  %vm202 = vcmp.eq.s32.totalorder %v72, %v172
  %vm203 = vcmp.eq.s32.totalorder %v72, %v173
  %vm204 = vcmp.eq.s32.totalorder %v72, %v174
  %v205 = vsel %vm175, 1, 0
  %v206 = vsel %vm176, 1, 0
  %v207 = vsel %vm177, 1, 0
  %v208 = vsel %vm178, 1, 0
  %v209 = vsel %vm179, 1, 0
  %v210 = vsel %vm180, 1, 0
  %v211 = vsel %vm181, 1, 0
  %v212 = vsel %vm182, 1, 0
  %v213 = vsel %vm183, 1, 0
  %v214 = vsel %vm184, 1, 0
  %v215 = vsel %vm185, 1, 0
  %v216 = vsel %vm186, 1, 0
  %v217 = vsel %vm187, 1, 0
  %v218 = vsel %vm188, 1, 0
  %v219 = vsel %vm189, 1, 0
  %v220 = vsel %vm190, 1, 0
  %v221 = vsel %vm191, 1, 0
  %v222 = vsel %vm192, 1, 0
  %v223 = vsel %vm193, 1, 0
  %v224 = vsel %vm194, 1, 0
  %v225 = vsel %vm195, 1, 0
  %v226 = vsel %vm196, 1, 0
  %v227 = vsel %vm197, 1, 0
  %v228 = vsel %vm198, 1, 0
  %v229 = vsel %vm199, 1, 0
  %v230 = vsel %vm200, 1, 0
  %v231 = vsel %vm201, 1, 0
  %v232 = vsel %vm202, 1, 0
  %v233 = vsel %vm203, 1, 0
  %v234 = vsel %vm204, 1, 0
  %v235 = vcvt.s32.f32 %v205
  %v236 = vcvt.s32.f32 %v206
  %v237 = vcvt.s32.f32 %v207
  %v238 = vcvt.s32.f32 %v208
  %v239 = vcvt.s32.f32 %v209
  %v240 = vcvt.s32.f32 %v210
  %v241 = vcvt.s32.f32 %v211
  %v242 = vcvt.s32.f32 %v212
  %v243 = vcvt.s32.f32 %v213
  %v244 = vcvt.s32.f32 %v214
  %v245 = vcvt.s32.f32 %v215
  %v246 = vcvt.s32.f32 %v216
  %v247 = vcvt.s32.f32 %v217
  %v248 = vcvt.s32.f32 %v218
  %v249 = vcvt.s32.f32 %v219
  %v250 = vcvt.s32.f32 %v220
  %v251 = vcvt.s32.f32 %v221
  %v252 = vcvt.s32.f32 %v222
  %v253 = vcvt.s32.f32 %v223
  %v254 = vcvt.s32.f32 %v224
  %v255 = vcvt.s32.f32 %v225
  %v256 = vcvt.s32.f32 %v226
  %v257 = vcvt.s32.f32 %v227
  %v258 = vcvt.s32.f32 %v228
  %v259 = vcvt.s32.f32 %v229
  %v260 = vcvt.s32.f32 %v230
  %v261 = vcvt.s32.f32 %v231
  %v262 = vcvt.s32.f32 %v232
  %v263 = vcvt.s32.f32 %v233
  %v264 = vcvt.s32.f32 %v234
  %v265 = vlaneseq
  %v266 = vand.u32 %v265, 127
  %267 = vset.pattern.permute.xlu0 0
  %268 = vperm.xlu0 %267, %v22
  %v269 = vpop.permute.xlu0 %268
  %270 = vset.pattern.permute.xlu0 0
  %271 = vperm.xlu0 %270, %v23
  %v272 = vpop.permute.xlu0 %271
  %273 = vset.pattern.permute.xlu0 0
  %274 = vperm.xlu0 %273, %v24
  %v275 = vpop.permute.xlu0 %274
  %276 = vset.pattern.permute.xlu0 0
  %277 = vperm.xlu0 %276, %v25
  %v278 = vpop.permute.xlu0 %277
  %279 = vset.pattern.permute.xlu0 0
  %280 = vperm.xlu0 %279, %v26
  %v281 = vpop.permute.xlu0 %280
  %282 = vset.pattern.permute.xlu0 0
  %283 = vperm.xlu0 %282, %v27
  %v284 = vpop.permute.xlu0 %283
  %285 = vset.pattern.permute.xlu0 0
  %286 = vperm.xlu0 %285, %v28
  %v287 = vpop.permute.xlu0 %286
  %288 = vset.pattern.permute.xlu0 0
  %289 = vperm.xlu0 %288, %v29
  %v290 = vpop.permute.xlu0 %289
  %291 = vset.pattern.permute.xlu0 0
  %292 = vperm.xlu0 %291, %v30
  %v293 = vpop.permute.xlu0 %292
  %294 = vset.pattern.permute.xlu0 0
  %295 = vperm.xlu0 %294, %v31
  %v296 = vpop.permute.xlu0 %295
  %297 = vset.pattern.permute.xlu0 0
  %298 = vperm.xlu0 %297, %v32
  %v299 = vpop.permute.xlu0 %298
  %300 = vset.pattern.permute.xlu0 0
  %301 = vperm.xlu0 %300, %v33
  %v302 = vpop.permute.xlu0 %301
  %303 = vset.pattern.permute.xlu0 0
  %304 = vperm.xlu0 %303, %v34
  %v305 = vpop.permute.xlu0 %304
  %306 = vset.pattern.permute.xlu0 0
  %307 = vperm.xlu0 %306, %v35
  %v308 = vpop.permute.xlu0 %307
  %309 = vset.pattern.permute.xlu0 0
  %310 = vperm.xlu0 %309, %v36
  %v311 = vpop.permute.xlu0 %310
  %312 = vset.pattern.permute.xlu0 0
  %313 = vperm.xlu0 %312, %v37
  %v314 = vpop.permute.xlu0 %313
  %315 = vset.pattern.permute.xlu0 0
  %316 = vperm.xlu0 %315, %v38
  %v317 = vpop.permute.xlu0 %316
  %318 = vset.pattern.permute.xlu0 0
  %319 = vperm.xlu0 %318, %v39
  %v320 = vpop.permute.xlu0 %319
  %321 = vset.pattern.permute.xlu0 0
  %322 = vperm.xlu0 %321, %v40
  %v323 = vpop.permute.xlu0 %322
  %324 = vset.pattern.permute.xlu0 0
  %325 = vperm.xlu0 %324, %v41
  %v326 = vpop.permute.xlu0 %325
  %327 = vset.pattern.permute.xlu0 0
  %328 = vperm.xlu0 %327, %v42
  %v329 = vpop.permute.xlu0 %328
  %330 = vset.pattern.permute.xlu0 0
  %331 = vperm.xlu0 %330, %v43
  %v332 = vpop.permute.xlu0 %331
  %333 = vset.pattern.permute.xlu0 0
  %334 = vperm.xlu0 %333, %v44
  %v335 = vpop.permute.xlu0 %334
  %336 = vset.pattern.permute.xlu0 0
  %337 = vperm.xlu0 %336, %v45
  %v338 = vpop.permute.xlu0 %337
  %339 = vset.pattern.permute.xlu0 0
  %340 = vperm.xlu0 %339, %v46
  %v341 = vpop.permute.xlu0 %340
  %342 = vset.pattern.permute.xlu0 0
  %343 = vperm.xlu0 %342, %v47
  %v344 = vpop.permute.xlu0 %343
  %345 = vset.pattern.permute.xlu0 0
  %346 = vperm.xlu0 %345, %v48
  %v347 = vpop.permute.xlu0 %346
  %348 = vset.pattern.permute.xlu0 0
  %349 = vperm.xlu0 %348, %v49
  %v350 = vpop.permute.xlu0 %349
  %351 = vset.pattern.permute.xlu0 0
  %352 = vperm.xlu0 %351, %v50
  %v353 = vpop.permute.xlu0 %352
  %354 = vset.pattern.permute.xlu0 0
  %355 = vperm.xlu0 %354, %v51
  %v356 = vpop.permute.xlu0 %355
  %357 = vset.pattern.permute.xlu0 0
  %358 = vperm.xlu0 %357, %v52
  %v359 = vpop.permute.xlu0 %358
  %360 = vset.pattern.permute.xlu0 0
  %361 = vperm.xlu0 %360, %v53
  %v362 = vpop.permute.xlu0 %361
  %363 = vset.pattern.permute.xlu0 0
  %364 = vperm.xlu0 %363, %v54
  %v365 = vpop.permute.xlu0 %364
  %366 = vset.pattern.permute.xlu0 0
  %367 = vperm.xlu0 %366, %v55
  %v368 = vpop.permute.xlu0 %367
  %369 = vset.pattern.permute.xlu0 0
  %370 = vperm.xlu0 %369, %v56
  %v371 = vpop.permute.xlu0 %370
  %372 = vset.pattern.permute.xlu0 0
  %373 = vperm.xlu0 %372, %v57
  %v374 = vpop.permute.xlu0 %373
  %375 = vset.pattern.permute.xlu0 0
  %376 = vperm.xlu0 %375, %v58
  %v377 = vpop.permute.xlu0 %376
  %378 = vset.pattern.permute.xlu0 0
  %379 = vperm.xlu0 %378, %v59
  %v380 = vpop.permute.xlu0 %379
  %381 = vset.pattern.permute.xlu0 0
  %382 = vperm.xlu0 %381, %v60
  %v383 = vpop.permute.xlu0 %382
  %384 = vset.pattern.permute.xlu0 0
  %385 = vperm.xlu0 %384, %v61
  %v386 = vpop.permute.xlu0 %385
  %vm387 = vcmp.eq.s32.totalorder %v266, %v269
  %vm388 = vcmp.eq.s32.totalorder %v266, %v272
  %vm389 = vcmp.eq.s32.totalorder %v266, %v275
  %vm390 = vcmp.eq.s32.totalorder %v266, %v278
  %vm391 = vcmp.eq.s32.totalorder %v266, %v281
  %vm392 = vcmp.eq.s32.totalorder %v266, %v284
  %vm393 = vcmp.eq.s32.totalorder %v266, %v287
  %vm394 = vcmp.eq.s32.totalorder %v266, %v290
  %vm395 = vcmp.eq.s32.totalorder %v266, %v293
  %vm396 = vcmp.eq.s32.totalorder %v266, %v296
  %vm397 = vcmp.eq.s32.totalorder %v266, %v299
  %vm398 = vcmp.eq.s32.totalorder %v266, %v302
  %vm399 = vcmp.eq.s32.totalorder %v266, %v305
  %vm400 = vcmp.eq.s32.totalorder %v266, %v308
  %vm401 = vcmp.eq.s32.totalorder %v266, %v311
  %vm402 = vcmp.eq.s32.totalorder %v266, %v314
  %vm403 = vcmp.eq.s32.totalorder %v266, %v317
  %vm404 = vcmp.eq.s32.totalorder %v266, %v320
  %vm405 = vcmp.eq.s32.totalorder %v266, %v323
  %vm406 = vcmp.eq.s32.totalorder %v266, %v326
  %vm407 = vcmp.eq.s32.totalorder %v266, %v329
  %vm408 = vcmp.eq.s32.totalorder %v266, %v332
  %vm409 = vcmp.eq.s32.totalorder %v266, %v335
  %vm410 = vcmp.eq.s32.totalorder %v266, %v338
  %vm411 = vcmp.eq.s32.totalorder %v266, %v341
  %vm412 = vcmp.eq.s32.totalorder %v266, %v344
  %vm413 = vcmp.eq.s32.totalorder %v266, %v347
  %vm414 = vcmp.eq.s32.totalorder %v266, %v350
  %vm415 = vcmp.eq.s32.totalorder %v266, %v353
  %vm416 = vcmp.eq.s32.totalorder %v266, %v356
  %vm417 = vcmp.eq.s32.totalorder %v266, %v359
  %vm418 = vcmp.eq.s32.totalorder %v266, %v362
  %vm419 = vcmp.eq.s32.totalorder %v266, %v365
  %vm420 = vcmp.eq.s32.totalorder %v266, %v368
  %vm421 = vcmp.eq.s32.totalorder %v266, %v371
  %vm422 = vcmp.eq.s32.totalorder %v266, %v374
  %vm423 = vcmp.eq.s32.totalorder %v266, %v377
  %vm424 = vcmp.eq.s32.totalorder %v266, %v380
  %vm425 = vcmp.eq.s32.totalorder %v266, %v383
  %vm426 = vcmp.eq.s32.totalorder %v266, %v386
  %v427 = vsel %vm387, 1, 0
  %v428 = vsel %vm388, 1, 0
  %v429 = vsel %vm389, 1, 0
  %v430 = vsel %vm390, 1, 0
  %v431 = vsel %vm391, 1, 0
  %v432 = vsel %vm392, 1, 0
  %v433 = vsel %vm393, 1, 0
  %v434 = vsel %vm394, 1, 0
  %v435 = vsel %vm395, 1, 0
  %v436 = vsel %vm396, 1, 0
  %v437 = vsel %vm397, 1, 0
  %v438 = vsel %vm398, 1, 0
  %v439 = vsel %vm399, 1, 0
  %v440 = vsel %vm400, 1, 0
  %v441 = vsel %vm401, 1, 0
  %v442 = vsel %vm402, 1, 0
  %v443 = vsel %vm403, 1, 0
  %v444 = vsel %vm404, 1, 0
  %v445 = vsel %vm405, 1, 0
  %v446 = vsel %vm406, 1, 0
  %v447 = vsel %vm407, 1, 0
  %v448 = vsel %vm408, 1, 0
  %v449 = vsel %vm409, 1, 0
  %v450 = vsel %vm410, 1, 0
  %v451 = vsel %vm411, 1, 0
  %v452 = vsel %vm412, 1, 0
  %v453 = vsel %vm413, 1, 0
  %v454 = vsel %vm414, 1, 0
  %v455 = vsel %vm415, 1, 0
  %v456 = vsel %vm416, 1, 0
  %v457 = vsel %vm417, 1, 0
  %v458 = vsel %vm418, 1, 0
  %v459 = vsel %vm419, 1, 0
  %v460 = vsel %vm420, 1, 0
  %v461 = vsel %vm421, 1, 0
  %v462 = vsel %vm422, 1, 0
  %v463 = vsel %vm423, 1, 0
  %v464 = vsel %vm424, 1, 0
  %v465 = vsel %vm425, 1, 0
  %v466 = vsel %vm426, 1, 0
  %v467 = vcvt.s32.f32 %v427
  %v468 = vcvt.s32.f32 %v428
  %v469 = vcvt.s32.f32 %v429
  %v470 = vcvt.s32.f32 %v430
  %v471 = vcvt.s32.f32 %v431
  %v472 = vcvt.s32.f32 %v432
  %v473 = vcvt.s32.f32 %v433
  %v474 = vcvt.s32.f32 %v434
  %v475 = vcvt.s32.f32 %v435
  %v476 = vcvt.s32.f32 %v436
  %v477 = vcvt.s32.f32 %v437
  %v478 = vcvt.s32.f32 %v438
  %v479 = vcvt.s32.f32 %v439
  %v480 = vcvt.s32.f32 %v440
  %v481 = vcvt.s32.f32 %v441
  %v482 = vcvt.s32.f32 %v442
  %v483 = vcvt.s32.f32 %v443
  %v484 = vcvt.s32.f32 %v444
  %v485 = vcvt.s32.f32 %v445
  %v486 = vcvt.s32.f32 %v446
  %v487 = vcvt.s32.f32 %v447
  %v488 = vcvt.s32.f32 %v448
  %v489 = vcvt.s32.f32 %v449
  %v490 = vcvt.s32.f32 %v450
  %v491 = vcvt.s32.f32 %v451
  %v492 = vcvt.s32.f32 %v452
  %v493 = vcvt.s32.f32 %v453
  %v494 = vcvt.s32.f32 %v454
  %v495 = vcvt.s32.f32 %v455
  %v496 = vcvt.s32.f32 %v456
  %v497 = vcvt.s32.f32 %v457
  %v498 = vcvt.s32.f32 %v458
  %v499 = vcvt.s32.f32 %v459
  %v500 = vcvt.s32.f32 %v460
  %v501 = vcvt.s32.f32 %v461
  %v502 = vcvt.s32.f32 %v462
  %v503 = vcvt.s32.f32 %v463
  %v504 = vcvt.s32.f32 %v464
  %v505 = vcvt.s32.f32 %v465
  %v506 = vcvt.s32.f32 %v466
  %v507 = vld [vmem:[%s3] sm:$0xff]
  %v508 = vld [vmem:[%s3 + $0x8] sm:$0xff]
  %v509 = vld [vmem:[%s3 + $0x10] sm:$0xff]
  %v510 = vld [vmem:[%s3 + $0x18] sm:$0xff]
  %v511 = vld [vmem:[%s3 + $0x20] sm:$0xff]
  %v512 = vld [vmem:[%s3 + $0x28] sm:$0xff]
  %v513 = vld [vmem:[%s3 + $0x30] sm:$0xff]
  %v514 = vld [vmem:[%s3 + $0x38] sm:$0xff]
  %vm515 = vcmask 64512
  %v517 = vsel %vm515, %v507, 0
  %v520 = vsel %vm515, %v508, 0
  %v523 = vsel %vm515, %v509, 0
  %v526 = vsel %vm515, %v510, 0
  %v529 = vsel %vm515, %v511, 0
  %v532 = vsel %vm515, %v512, 0
  %v535 = vsel %vm515, %v513, 0
  %v538 = vsel %vm515, %v514, 0
  %540 = vmatpush.msra.mxu0 0.0
  %541 = vmatpush.msra.mxu0 0.0
  %542 = vmatpush.msra.mxu0 0.0
  %543 = vmatpush.msra.mxu0 0.0
  %544 = vmatpush.msra.mxu0 0.0
  %545 = vmatpush.msra.mxu0 0.0
  %546 = vmatpush.msra.mxu0 0.0
  %547 = vmatpush.msra.mxu0 0.0
  %548 = vmatpush.msra.mxu0 0.0
  %549 = vmatpush.msra.mxu0 0.0
  %550 = vmatpush.msra.mxu0 0.0
  %551 = vmatpush.msra.mxu0 0.0
  %552 = vmatpush.msra.mxu0 0.0
  %553 = vmatpush.msra.mxu0 0.0
  %554 = vmatpush.msra.mxu0 0.0
  %555 = vmatpush.msra.mxu0 %v20
  %556 = vmatmul.f32.gmra.mxu0 %v517
  %v557 = vpop.f32.mrf.mxu0
  %v558 = vadd.f32 0.0, %v557
  %559 = vmatmul.f32.gmra.mxu0 %v520
  %v560 = vpop.f32.mrf.mxu0
  %v561 = vadd.f32 0.0, %v560
  %562 = vmatmul.f32.gmra.mxu0 %v523
  %v563 = vpop.f32.mrf.mxu0
  %v564 = vadd.f32 0.0, %v563
  %565 = vmatmul.f32.gmra.mxu0 %v526
  %v566 = vpop.f32.mrf.mxu0
  %v567 = vadd.f32 0.0, %v566
  %568 = vmatmul.f32.gmra.mxu0 %v529
  %v569 = vpop.f32.mrf.mxu0
  %v570 = vadd.f32 0.0, %v569
  %571 = vmatmul.f32.gmra.mxu0 %v532
  %v572 = vpop.f32.mrf.mxu0
  %v573 = vadd.f32 0.0, %v572
  %574 = vmatmul.f32.gmra.mxu0 %v535
  %v575 = vpop.f32.mrf.mxu0
  %v576 = vadd.f32 0.0, %v575
  %577 = vmatmul.f32.gmra.mxu0 %v538
  %v578 = vpop.f32.mrf.mxu0
  %v579 = vadd.f32 0.0, %v578
  %580 = vdwg.mxu0
  %vm581 = vcmask 654336
  %v583 = vsel %vm581, %v570, 0
  %v586 = vsel %vm581, %v573, 0
  %v589 = vsel %vm581, %v576, 0
  %v592 = vsel %vm581, %v579, 0
  %594 = vmatpush.msra.mxu0 0.0
  %595 = vmatpush.msra.mxu0 0.0
  %596 = vmatpush.msra.mxu0 0.0
  %597 = vmatpush.msra.mxu0 0.0
  %598 = vmatpush.msra.mxu0 0.0
  %599 = vmatpush.msra.mxu0 0.0
  %600 = vmatpush.msra.mxu0 %v262
  %601 = vmatpush.msra.mxu0 %v259
  %602 = vmatpush.msra.mxu0 %v256
  %603 = vmatpush.msra.mxu0 %v253
  %604 = vmatpush.msra.mxu0 %v250
  %605 = vmatpush.msra.mxu0 %v247
  %606 = vmatpush.msra.mxu0 %v244
  %607 = vmatpush.msra.mxu0 %v241
  %608 = vmatpush.msra.mxu0 %v238
  %609 = vmatpush.msra.mxu0 %v235
  %610 = vmatmul.f32.gmra.mxu0 %v583
  %v611 = vpop.f32.mrf.mxu0
  %v612 = vadd.f32 0.0, %v611
  %613 = vmatmul.f32.gmra.mxu0 %v586
  %v614 = vpop.f32.mrf.mxu0
  %v615 = vadd.f32 0.0, %v614
  %616 = vmatmul.f32.gmra.mxu0 %v589
  %v617 = vpop.f32.mrf.mxu0
  %v618 = vadd.f32 0.0, %v617
  %619 = vmatmul.f32.gmra.mxu0 %v592
  %v620 = vpop.f32.mrf.mxu0
  %v621 = vadd.f32 0.0, %v620
  %622 = vdwg.mxu0
  %623 = vmatpush.msra.mxu0 0.0
  %624 = vmatpush.msra.mxu0 0.0
  %625 = vmatpush.msra.mxu0 0.0
  %626 = vmatpush.msra.mxu0 0.0
  %627 = vmatpush.msra.mxu0 0.0
  %628 = vmatpush.msra.mxu0 0.0
  %629 = vmatpush.msra.mxu0 %v263
  %630 = vmatpush.msra.mxu0 %v260
  %631 = vmatpush.msra.mxu0 %v257
  %632 = vmatpush.msra.mxu0 %v254
  %633 = vmatpush.msra.mxu0 %v251
  %634 = vmatpush.msra.mxu0 %v248
  %635 = vmatpush.msra.mxu0 %v245
  %636 = vmatpush.msra.mxu0 %v242
  %637 = vmatpush.msra.mxu0 %v239
  %638 = vmatpush.msra.mxu0 %v236
  %639 = vmatmul.f32.gmra.mxu0 %v583
  %v640 = vpop.f32.mrf.mxu0
  %v641 = vadd.f32 0.0, %v640
  %642 = vmatmul.f32.gmra.mxu0 %v586
  %v643 = vpop.f32.mrf.mxu0
  %v644 = vadd.f32 0.0, %v643
  %645 = vmatmul.f32.gmra.mxu0 %v589
  %v646 = vpop.f32.mrf.mxu0
  %v647 = vadd.f32 0.0, %v646
  %648 = vmatmul.f32.gmra.mxu0 %v592
  %v649 = vpop.f32.mrf.mxu0
  %v650 = vadd.f32 0.0, %v649
  %651 = vdwg.mxu0
  %652 = vmatpush.msra.mxu0 0.0
  %653 = vmatpush.msra.mxu0 0.0
  %654 = vmatpush.msra.mxu0 0.0
  %655 = vmatpush.msra.mxu0 0.0
  %656 = vmatpush.msra.mxu0 0.0
  %657 = vmatpush.msra.mxu0 0.0
  %658 = vmatpush.msra.mxu0 %v264
  %659 = vmatpush.msra.mxu0 %v261
  %660 = vmatpush.msra.mxu0 %v258
  %661 = vmatpush.msra.mxu0 %v255
  %662 = vmatpush.msra.mxu0 %v252
  %663 = vmatpush.msra.mxu0 %v249
  %664 = vmatpush.msra.mxu0 %v246
  %665 = vmatpush.msra.mxu0 %v243
  %666 = vmatpush.msra.mxu0 %v240
  %667 = vmatpush.msra.mxu0 %v237
  %668 = vmatmul.f32.gmra.mxu0 %v583
  %v669 = vpop.f32.mrf.mxu0
  %v670 = vadd.f32 0.0, %v669
  %671 = vmatmul.f32.gmra.mxu0 %v586
  %v672 = vpop.f32.mrf.mxu0
  %v673 = vadd.f32 0.0, %v672
  %674 = vmatmul.f32.gmra.mxu0 %v589
  %v675 = vpop.f32.mrf.mxu0
  %v676 = vadd.f32 0.0, %v675
  %677 = vmatmul.f32.gmra.mxu0 %v592
  %v678 = vpop.f32.mrf.mxu0
  %v679 = vadd.f32 0.0, %v678
  %680 = vdwg.mxu0
  %v682 = vsel %vm581, %v558, 0
  %v685 = vsel %vm581, %v561, 0
  %v688 = vsel %vm581, %v564, 0
  %v691 = vsel %vm581, %v567, 0
  %693 = vmatpush.msra.mxu0 0.0
  %694 = vmatpush.msra.mxu0 0.0
  %695 = vmatpush.msra.mxu0 0.0
  %696 = vmatpush.msra.mxu0 0.0
  %697 = vmatpush.msra.mxu0 0.0
  %698 = vmatpush.msra.mxu0 0.0
  %699 = vmatpush.msra.mxu0 %v166
  %700 = vmatpush.msra.mxu0 %v163
  %701 = vmatpush.msra.mxu0 %v160
  %702 = vmatpush.msra.mxu0 %v157
  %703 = vmatpush.msra.mxu0 %v154
  %704 = vmatpush.msra.mxu0 %v151
  %705 = vmatpush.msra.mxu0 %v148
  %706 = vmatpush.msra.mxu0 %v145
  %707 = vmatpush.msra.mxu0 %v142
  %708 = vmatpush.msra.mxu0 %v139
  %709 = vmatmul.f32.gmra.mxu0 %v682
  %v710 = vpop.f32.mrf.mxu0
  %v711 = vadd.f32 %v612, %v710
  %712 = vmatmul.f32.gmra.mxu0 %v685
  %v713 = vpop.f32.mrf.mxu0
  %v714 = vadd.f32 %v615, %v713
  %715 = vmatmul.f32.gmra.mxu0 %v688
  %v716 = vpop.f32.mrf.mxu0
  %v717 = vadd.f32 %v618, %v716
  %718 = vmatmul.f32.gmra.mxu0 %v691
  %v719 = vpop.f32.mrf.mxu0
  %v720 = vadd.f32 %v621, %v719
  %721 = vdwg.mxu0
  %722 = vmatpush.msra.mxu0 0.0
  %723 = vmatpush.msra.mxu0 0.0
  %724 = vmatpush.msra.mxu0 0.0
  %725 = vmatpush.msra.mxu0 0.0
  %726 = vmatpush.msra.mxu0 0.0
  %727 = vmatpush.msra.mxu0 0.0
  %728 = vmatpush.msra.mxu0 %v167
  %729 = vmatpush.msra.mxu0 %v164
  %730 = vmatpush.msra.mxu0 %v161
  %731 = vmatpush.msra.mxu0 %v158
  %732 = vmatpush.msra.mxu0 %v155
  %733 = vmatpush.msra.mxu0 %v152
  %734 = vmatpush.msra.mxu0 %v149
  %735 = vmatpush.msra.mxu0 %v146
  %736 = vmatpush.msra.mxu0 %v143
  %737 = vmatpush.msra.mxu0 %v140
  %738 = vmatmul.f32.gmra.mxu0 %v682
  %v739 = vpop.f32.mrf.mxu0
  %v740 = vadd.f32 %v641, %v739
  %741 = vmatmul.f32.gmra.mxu0 %v685
  %v742 = vpop.f32.mrf.mxu0
  %v743 = vadd.f32 %v644, %v742
  %744 = vmatmul.f32.gmra.mxu0 %v688
  %v745 = vpop.f32.mrf.mxu0
  %v746 = vadd.f32 %v647, %v745
  %747 = vmatmul.f32.gmra.mxu0 %v691
  %v748 = vpop.f32.mrf.mxu0
  %v749 = vadd.f32 %v650, %v748
  %750 = vdwg.mxu0
  %751 = vmatpush.msra.mxu0 0.0
  %752 = vmatpush.msra.mxu0 0.0
  %753 = vmatpush.msra.mxu0 0.0
  %754 = vmatpush.msra.mxu0 0.0
  %755 = vmatpush.msra.mxu0 0.0
  %756 = vmatpush.msra.mxu0 0.0
  %757 = vmatpush.msra.mxu0 %v168
  %758 = vmatpush.msra.mxu0 %v165
  %759 = vmatpush.msra.mxu0 %v162
  %760 = vmatpush.msra.mxu0 %v159
  %761 = vmatpush.msra.mxu0 %v156
  %762 = vmatpush.msra.mxu0 %v153
  %763 = vmatpush.msra.mxu0 %v150
  %764 = vmatpush.msra.mxu0 %v147
  %765 = vmatpush.msra.mxu0 %v144
  %766 = vmatpush.msra.mxu0 %v141
  %767 = vmatmul.f32.gmra.mxu0 %v682
  %v768 = vpop.f32.mrf.mxu0
  %v769 = vadd.f32 %v670, %v768
  %770 = vmatmul.f32.gmra.mxu0 %v685
  %v771 = vpop.f32.mrf.mxu0
  %v772 = vadd.f32 %v673, %v771
  %773 = vmatmul.f32.gmra.mxu0 %v688
  %v774 = vpop.f32.mrf.mxu0
  %v775 = vadd.f32 %v676, %v774
  %776 = vmatmul.f32.gmra.mxu0 %v691
  %v777 = vpop.f32.mrf.mxu0
  %v778 = vadd.f32 %v679, %v777
  %779 = vdwg.mxu0
  %v780 = vld [vmem:[%s4] sm:$0xff]
  %v781 = vld [vmem:[%s4 + $0x8] sm:$0xff]
  %v782 = vld [vmem:[%s4 + $0x10] sm:$0xff]
  %v783 = vld [vmem:[%s4 + $0x18] sm:$0xff]
  %785 = vset.pattern.permute.xlu0 0
  %786 = vperm.xlu0 %785, %v780
  %v787 = vpop.permute.xlu0 %786
  %790 = vset.pattern.permute.xlu0 0
  %791 = vperm.xlu0 %790, %v781
  %v792 = vpop.permute.xlu0 %791
  %795 = vset.pattern.permute.xlu0 0
  %796 = vperm.xlu0 %795, %v782
  %v797 = vpop.permute.xlu0 %796
  %800 = vset.pattern.permute.xlu0 0
  %801 = vperm.xlu0 %800, %v783
  %v802 = vpop.permute.xlu0 %801
  %v804 = vadd.f32 %v711, %v787
  %v805 = vadd.f32 %v740, %v787
  %v806 = vadd.f32 %v769, %v787
  %v807 = vadd.f32 %v714, %v792
  %v808 = vadd.f32 %v743, %v792
  %v809 = vadd.f32 %v772, %v792
  %v810 = vadd.f32 %v717, %v797
  %v811 = vadd.f32 %v746, %v797
  %v812 = vadd.f32 %v775, %v797
  %v813 = vadd.f32 %v720, %v802
  %v814 = vadd.f32 %v749, %v802
  %v815 = vadd.f32 %v778, %v802
  %v816 = vmax.f32 %v804, 0.0
  %v817 = vmax.f32 %v805, 0.0
  %v818 = vmax.f32 %v806, 0.0
  %v819 = vmax.f32 %v807, 0.0
  %v820 = vmax.f32 %v808, 0.0
  %v821 = vmax.f32 %v809, 0.0
  %v822 = vmax.f32 %v810, 0.0
  %v823 = vmax.f32 %v811, 0.0
  %v824 = vmax.f32 %v812, 0.0
  %v825 = vmax.f32 %v813, 0.0
  %v826 = vmax.f32 %v814, 0.0
  %v827 = vmax.f32 %v815, 0.0
  %v828 = vld [vmem:[%s3 + $0x40] sm:$0xff]
  %v829 = vld [vmem:[%s3 + $0x48] sm:$0xff]
  %v830 = vld [vmem:[%s3 + $0x50] sm:$0xff]
  %v831 = vld [vmem:[%s3 + $0x58] sm:$0xff]
  %832 = vset.pattern.permute.xlu0 1
  %833 = vperm.xlu0 %832, %v780
  %v834 = vpop.permute.xlu0 %833
  %836 = vset.pattern.permute.xlu0 1
  %837 = vperm.xlu0 %836, %v781
  %v838 = vpop.permute.xlu0 %837
  %840 = vset.pattern.permute.xlu0 1
  %841 = vperm.xlu0 %840, %v782
  %v842 = vpop.permute.xlu0 %841
  %844 = vset.pattern.permute.xlu0 1
  %845 = vperm.xlu0 %844, %v783
  %v846 = vpop.permute.xlu0 %845
  %vm848 = vcmask 261120
  %v850 = vsel %vm848, %v828, 0
  %v853 = vsel %vm848, %v829, 0
  %v856 = vsel %vm848, %v830, 0
  %v859 = vsel %vm848, %v831, 0
  %861 = vmatpush.msra.mxu0 0.0
  %862 = vmatpush.msra.mxu0 0.0
  %863 = vmatpush.msra.mxu0 0.0
  %864 = vmatpush.msra.mxu0 0.0
  %865 = vmatpush.msra.mxu0 0.0
  %866 = vmatpush.msra.mxu0 0.0
  %867 = vmatpush.msra.mxu0 0.0
  %868 = vmatpush.msra.mxu0 0.0
  %869 = vmatpush.msra.mxu0 0.0
  %870 = vmatpush.msra.mxu0 0.0
  %871 = vmatpush.msra.mxu0 0.0
  %872 = vmatpush.msra.mxu0 0.0
  %873 = vmatpush.msra.mxu0 %v825
  %874 = vmatpush.msra.mxu0 %v822
  %875 = vmatpush.msra.mxu0 %v819
  %876 = vmatpush.msra.mxu0 %v816
  %877 = vmatmul.f32.gmra.mxu0 %v850
  %v878 = vpop.f32.mrf.mxu0
  %v879 = vadd.f32 %v834, %v878
  %880 = vmatmul.f32.gmra.mxu0 %v853
  %v881 = vpop.f32.mrf.mxu0
  %v882 = vadd.f32 %v838, %v881
  %883 = vmatmul.f32.gmra.mxu0 %v856
  %v884 = vpop.f32.mrf.mxu0
  %v885 = vadd.f32 %v842, %v884
  %886 = vmatmul.f32.gmra.mxu0 %v859
  %v887 = vpop.f32.mrf.mxu0
  %v888 = vadd.f32 %v846, %v887
  %889 = vdwg.mxu0
  %890 = vmatpush.msra.mxu0 0.0
  %891 = vmatpush.msra.mxu0 0.0
  %892 = vmatpush.msra.mxu0 0.0
  %893 = vmatpush.msra.mxu0 0.0
  %894 = vmatpush.msra.mxu0 0.0
  %895 = vmatpush.msra.mxu0 0.0
  %896 = vmatpush.msra.mxu0 0.0
  %897 = vmatpush.msra.mxu0 0.0
  %898 = vmatpush.msra.mxu0 0.0
  %899 = vmatpush.msra.mxu0 0.0
  %900 = vmatpush.msra.mxu0 0.0
  %901 = vmatpush.msra.mxu0 0.0
  %902 = vmatpush.msra.mxu0 %v826
  %903 = vmatpush.msra.mxu0 %v823
  %904 = vmatpush.msra.mxu0 %v820
  %905 = vmatpush.msra.mxu0 %v817
  %906 = vmatmul.f32.gmra.mxu0 %v850
  %v907 = vpop.f32.mrf.mxu0
  %v908 = vadd.f32 %v834, %v907
  %909 = vmatmul.f32.gmra.mxu0 %v853
  %v910 = vpop.f32.mrf.mxu0
  %v911 = vadd.f32 %v838, %v910
  %912 = vmatmul.f32.gmra.mxu0 %v856
  %v913 = vpop.f32.mrf.mxu0
  %v914 = vadd.f32 %v842, %v913
  %915 = vmatmul.f32.gmra.mxu0 %v859
  %v916 = vpop.f32.mrf.mxu0
  %v917 = vadd.f32 %v846, %v916
  %918 = vdwg.mxu0
  %919 = vmatpush.msra.mxu0 0.0
  %920 = vmatpush.msra.mxu0 0.0
  %921 = vmatpush.msra.mxu0 0.0
  %922 = vmatpush.msra.mxu0 0.0
  %923 = vmatpush.msra.mxu0 0.0
  %924 = vmatpush.msra.mxu0 0.0
  %925 = vmatpush.msra.mxu0 0.0
  %926 = vmatpush.msra.mxu0 0.0
  %927 = vmatpush.msra.mxu0 0.0
  %928 = vmatpush.msra.mxu0 0.0
  %929 = vmatpush.msra.mxu0 0.0
  %930 = vmatpush.msra.mxu0 0.0
  %931 = vmatpush.msra.mxu0 %v827
  %932 = vmatpush.msra.mxu0 %v824
  %933 = vmatpush.msra.mxu0 %v821
  %934 = vmatpush.msra.mxu0 %v818
  %935 = vmatmul.f32.gmra.mxu0 %v850
  %v936 = vpop.f32.mrf.mxu0
  %v937 = vadd.f32 %v834, %v936
  %938 = vmatmul.f32.gmra.mxu0 %v853
  %v939 = vpop.f32.mrf.mxu0
  %v940 = vadd.f32 %v838, %v939
  %941 = vmatmul.f32.gmra.mxu0 %v856
  %v942 = vpop.f32.mrf.mxu0
  %v943 = vadd.f32 %v842, %v942
  %944 = vmatmul.f32.gmra.mxu0 %v859
  %v945 = vpop.f32.mrf.mxu0
  %v946 = vadd.f32 %v846, %v945
  %947 = vdwg.mxu0
  %v948 = vadd.f32 %v879, %v882
  %v949 = vadd.f32 %v948, %v885
  %v950 = vadd.f32 %v949, %v888
  %v951 = vrot.slane %v950, 4
  %v952 = vadd.f32 %v950, %v951
  %v953 = vrot.slane %v952, 2
  %v954 = vadd.f32 %v952, %v953
  %v955 = vrot.slane %v954, 1
  %v956 = vadd.f32 %v954, %v955
  %v957 = vadd.f32 %v908, %v911
  %v958 = vadd.f32 %v957, %v914
  %v959 = vadd.f32 %v958, %v917
  %v960 = vrot.slane %v959, 4
  %v961 = vadd.f32 %v959, %v960
  %v962 = vrot.slane %v961, 2
  %v963 = vadd.f32 %v961, %v962
  %v964 = vrot.slane %v963, 1
  %v965 = vadd.f32 %v963, %v964
  %vm966 = vcmask 523264
  %v967 = vsel %vm966, %v937, 0.0
  %v968 = vsel %vm966, %v940, 0.0
  %v969 = vadd.f32 %v967, %v968
  %v970 = vsel %vm966, %v943, 0.0
  %v971 = vadd.f32 %v969, %v970
  %v972 = vsel %vm966, %v946, 0.0
  %v973 = vadd.f32 %v971, %v972
  %v974 = vrot.slane %v973, 4
  %v975 = vadd.f32 %v973, %v974
  %v976 = vrot.slane %v975, 2
  %v977 = vadd.f32 %v975, %v976
  %v978 = vrot.slane %v977, 1
  %v979 = vadd.f32 %v977, %v978
  %v980 = vrcp.pop 32.0
  %v981 = vmul.f32 32.0, %v980
  %v982 = vsub.f32 1.0, %v981
  %v983 = vmul.f32 %v980, %v982
  %v984 = vadd.f32 %v980, %v983
  %vm985 = vweird.f32 %v980
  %v986 = vsel %vm985, %v980, %v984
  %v987 = vmul.f32 %v956, %v986
  %v988 = vmul.f32 %v965, %v986
  %v989 = vmul.f32 %v979, %v986
  %v990 = vsub.f32 %v879, %v987
  %v991 = vsub.f32 %v908, %v988
  %v992 = vsub.f32 %v937, %v989
  %v993 = vsub.f32 %v882, %v987
  %v994 = vsub.f32 %v911, %v988
  %v995 = vsub.f32 %v940, %v989
  %v996 = vsub.f32 %v885, %v987
  %v997 = vsub.f32 %v914, %v988
  %v998 = vsub.f32 %v943, %v989
  %v999 = vsub.f32 %v888, %v987
  %v1000 = vsub.f32 %v917, %v988
  %v1001 = vsub.f32 %v946, %v989
  %v1002 = vmul.f32 %v990, %v990
  %v1003 = vmul.f32 %v991, %v991
  %v1004 = vmul.f32 %v992, %v992
  %v1005 = vmul.f32 %v993, %v993
  %v1006 = vmul.f32 %v994, %v994
  %v1007 = vmul.f32 %v995, %v995
  %v1008 = vmul.f32 %v996, %v996
  %v1009 = vmul.f32 %v997, %v997
  %v1010 = vmul.f32 %v998, %v998
  %v1011 = vmul.f32 %v999, %v999
  %v1012 = vmul.f32 %v1000, %v1000
  %v1013 = vmul.f32 %v1001, %v1001
  %v1014 = vadd.f32 %v1002, %v1005
  %v1015 = vadd.f32 %v1014, %v1008
  %v1016 = vadd.f32 %v1015, %v1011
  %v1017 = vrot.slane %v1016, 4
  %v1018 = vadd.f32 %v1016, %v1017
  %v1019 = vrot.slane %v1018, 2
  %v1020 = vadd.f32 %v1018, %v1019
  %v1021 = vrot.slane %v1020, 1
  %v1022 = vadd.f32 %v1020, %v1021
  %v1023 = vadd.f32 %v1003, %v1006
  %v1024 = vadd.f32 %v1023, %v1009
  %v1025 = vadd.f32 %v1024, %v1012
  %v1026 = vrot.slane %v1025, 4
  %v1027 = vadd.f32 %v1025, %v1026
  %v1028 = vrot.slane %v1027, 2
  %v1029 = vadd.f32 %v1027, %v1028
  %v1030 = vrot.slane %v1029, 1
  %v1031 = vadd.f32 %v1029, %v1030
  %v1032 = vsel %vm966, %v1004, 0.0
  %v1033 = vsel %vm966, %v1007, 0.0
  %v1034 = vadd.f32 %v1032, %v1033
  %v1035 = vsel %vm966, %v1010, 0.0
  %v1036 = vadd.f32 %v1034, %v1035
  %v1037 = vsel %vm966, %v1013, 0.0
  %v1038 = vadd.f32 %v1036, %v1037
  %v1039 = vrot.slane %v1038, 4
  %v1040 = vadd.f32 %v1038, %v1039
  %v1041 = vrot.slane %v1040, 2
  %v1042 = vadd.f32 %v1040, %v1041
  %v1043 = vrot.slane %v1042, 1
  %v1044 = vadd.f32 %v1042, %v1043
  %v1045 = vmul.f32 %v1022, %v986
  %v1046 = vmul.f32 %v1031, %v986
  %v1047 = vmul.f32 %v1044, %v986
  %v1048 = vadd.f32 %v1045, 1e-05
  %v1049 = vadd.f32 %v1046, 1e-05
  %v1050 = vadd.f32 %v1047, 1e-05
  %v1051 = vrsqrt.pop %v1048
  %v1052 = vmul.f32 %v1051, %v1048
  %v1053 = vmul.f32 %v1052, %v1051
  %v1054 = vmul.f32 0.5, %v1053
  %v1055 = vsub.f32 1.5, %v1054
  %v1056 = vmul.f32 %v1051, %v1055
  %vm1057 = vweird.f32 %v1048
  %vm1058 = vweird.f32 %v1051
  %vm1059 = vmor %vm1057, %vm1058
  %v1060 = vsel %vm1059, %v1051, %v1056
  %v1061 = vrsqrt.pop %v1049
  %v1062 = vmul.f32 %v1061, %v1049
  %v1063 = vmul.f32 %v1062, %v1061
  %v1064 = vmul.f32 0.5, %v1063
  %v1065 = vsub.f32 1.5, %v1064
  %v1066 = vmul.f32 %v1061, %v1065
  %vm1067 = vweird.f32 %v1049
  %vm1068 = vweird.f32 %v1061
  %vm1069 = vmor %vm1067, %vm1068
  %v1070 = vsel %vm1069, %v1061, %v1066
  %v1071 = vrsqrt.pop %v1050
  %v1072 = vmul.f32 %v1071, %v1050
  %v1073 = vmul.f32 %v1072, %v1071
  %v1074 = vmul.f32 0.5, %v1073
  %v1075 = vsub.f32 1.5, %v1074
  %v1076 = vmul.f32 %v1071, %v1075
  %vm1077 = vweird.f32 %v1050
  %vm1078 = vweird.f32 %v1071
  %vm1079 = vmor %vm1077, %vm1078
  %v1080 = vsel %vm1079, %v1071, %v1076
  %1081 = vset.pattern.permute.xlu0 2
  %1082 = vperm.xlu0 %1081, %v780
  %v1083 = vpop.permute.xlu0 %1082
  %1085 = vset.pattern.permute.xlu0 2
  %1086 = vperm.xlu0 %1085, %v781
  %v1087 = vpop.permute.xlu0 %1086
  %1089 = vset.pattern.permute.xlu0 2
  %1090 = vperm.xlu0 %1089, %v782
  %v1091 = vpop.permute.xlu0 %1090
  %1093 = vset.pattern.permute.xlu0 2
  %1094 = vperm.xlu0 %1093, %v783
  %v1095 = vpop.permute.xlu0 %1094
  %v1097 = vmul.f32 %v1083, %v1060
  %v1098 = vmul.f32 %v1083, %v1070
  %v1099 = vmul.f32 %v1083, %v1080
  %v1100 = vmul.f32 %v1087, %v1060
  %v1101 = vmul.f32 %v1087, %v1070
  %v1102 = vmul.f32 %v1087, %v1080
  %v1103 = vmul.f32 %v1091, %v1060
  %v1104 = vmul.f32 %v1091, %v1070
  %v1105 = vmul.f32 %v1091, %v1080
  %v1106 = vmul.f32 %v1095, %v1060
  %v1107 = vmul.f32 %v1095, %v1070
  %v1108 = vmul.f32 %v1095, %v1080
  %v1109 = vmul.f32 %v990, %v1097
  %v1110 = vmul.f32 %v991, %v1098
  %v1111 = vmul.f32 %v992, %v1099
  %v1112 = vmul.f32 %v993, %v1100
  %v1113 = vmul.f32 %v994, %v1101
  %v1114 = vmul.f32 %v995, %v1102
  %v1115 = vmul.f32 %v996, %v1103
  %v1116 = vmul.f32 %v997, %v1104
  %v1117 = vmul.f32 %v998, %v1105
  %v1118 = vmul.f32 %v999, %v1106
  %v1119 = vmul.f32 %v1000, %v1107
  %v1120 = vmul.f32 %v1001, %v1108
  %1121 = vset.pattern.permute.xlu0 3
  %1122 = vperm.xlu0 %1121, %v780
  %v1123 = vpop.permute.xlu0 %1122
  %1125 = vset.pattern.permute.xlu0 3
  %1126 = vperm.xlu0 %1125, %v781
  %v1127 = vpop.permute.xlu0 %1126
  %1129 = vset.pattern.permute.xlu0 3
  %1130 = vperm.xlu0 %1129, %v782
  %v1131 = vpop.permute.xlu0 %1130
  %1133 = vset.pattern.permute.xlu0 3
  %1134 = vperm.xlu0 %1133, %v783
  %v1135 = vpop.permute.xlu0 %1134
  %v1137 = vadd.f32 %v1109, %v1123
  %v1138 = vadd.f32 %v1110, %v1123
  %v1139 = vadd.f32 %v1111, %v1123
  %v1140 = vadd.f32 %v1112, %v1127
  %v1141 = vadd.f32 %v1113, %v1127
  %v1142 = vadd.f32 %v1114, %v1127
  %v1143 = vadd.f32 %v1115, %v1131
  %v1144 = vadd.f32 %v1116, %v1131
  %v1145 = vadd.f32 %v1117, %v1131
  %v1146 = vadd.f32 %v1118, %v1135
  %v1147 = vadd.f32 %v1119, %v1135
  %v1148 = vadd.f32 %v1120, %v1135
  %v1149 = vmax.f32 %v1137, 0.0
  %v1150 = vmax.f32 %v1138, 0.0
  %v1151 = vmax.f32 %v1139, 0.0
  %v1152 = vmax.f32 %v1140, 0.0
  %v1153 = vmax.f32 %v1141, 0.0
  %v1154 = vmax.f32 %v1142, 0.0
  %v1155 = vmax.f32 %v1143, 0.0
  %v1156 = vmax.f32 %v1144, 0.0
  %v1157 = vmax.f32 %v1145, 0.0
  %v1158 = vmax.f32 %v1146, 0.0
  %v1159 = vmax.f32 %v1147, 0.0
  %v1160 = vmax.f32 %v1148, 0.0
  %v1161 = vld [vmem:[%s3 + $0x60] sm:$0xff]
  %v1162 = vld [vmem:[%s3 + $0x68] sm:$0xff]
  %v1163 = vld [vmem:[%s3 + $0x70] sm:$0xff]
  %v1164 = vld [vmem:[%s3 + $0x78] sm:$0xff]
  %1165 = vset.pattern.permute.xlu0 4
  %1166 = vperm.xlu0 %1165, %v780
  %v1167 = vpop.permute.xlu0 %1166
  %1169 = vset.pattern.permute.xlu0 4
  %1170 = vperm.xlu0 %1169, %v781
  %v1171 = vpop.permute.xlu0 %1170
  %1173 = vset.pattern.permute.xlu0 4
  %1174 = vperm.xlu0 %1173, %v782
  %v1175 = vpop.permute.xlu0 %1174
  %1177 = vset.pattern.permute.xlu0 4
  %1178 = vperm.xlu0 %1177, %v783
  %v1179 = vpop.permute.xlu0 %1178
  %v1182 = vsel %vm848, %v1161, 0
  %v1185 = vsel %vm848, %v1162, 0
  %v1188 = vsel %vm848, %v1163, 0
  %v1191 = vsel %vm848, %v1164, 0
  %1193 = vmatpush.msra.mxu0 0.0
  %1194 = vmatpush.msra.mxu0 0.0
  %1195 = vmatpush.msra.mxu0 0.0
  %1196 = vmatpush.msra.mxu0 0.0
  %1197 = vmatpush.msra.mxu0 0.0
  %1198 = vmatpush.msra.mxu0 0.0
  %1199 = vmatpush.msra.mxu0 0.0
  %1200 = vmatpush.msra.mxu0 0.0
  %1201 = vmatpush.msra.mxu0 0.0
  %1202 = vmatpush.msra.mxu0 0.0
  %1203 = vmatpush.msra.mxu0 0.0
  %1204 = vmatpush.msra.mxu0 0.0
  %1205 = vmatpush.msra.mxu0 %v1158
  %1206 = vmatpush.msra.mxu0 %v1155
  %1207 = vmatpush.msra.mxu0 %v1152
  %1208 = vmatpush.msra.mxu0 %v1149
  %1209 = vmatmul.f32.gmra.mxu0 %v1182
  %v1210 = vpop.f32.mrf.mxu0
  %v1211 = vadd.f32 %v1167, %v1210
  %1212 = vmatmul.f32.gmra.mxu0 %v1185
  %v1213 = vpop.f32.mrf.mxu0
  %v1214 = vadd.f32 %v1171, %v1213
  %1215 = vmatmul.f32.gmra.mxu0 %v1188
  %v1216 = vpop.f32.mrf.mxu0
  %v1217 = vadd.f32 %v1175, %v1216
  %1218 = vmatmul.f32.gmra.mxu0 %v1191
  %v1219 = vpop.f32.mrf.mxu0
  %v1220 = vadd.f32 %v1179, %v1219
  %1221 = vdwg.mxu0
  %1222 = vmatpush.msra.mxu0 0.0
  %1223 = vmatpush.msra.mxu0 0.0
  %1224 = vmatpush.msra.mxu0 0.0
  %1225 = vmatpush.msra.mxu0 0.0
  %1226 = vmatpush.msra.mxu0 0.0
  %1227 = vmatpush.msra.mxu0 0.0
  %1228 = vmatpush.msra.mxu0 0.0
  %1229 = vmatpush.msra.mxu0 0.0
  %1230 = vmatpush.msra.mxu0 0.0
  %1231 = vmatpush.msra.mxu0 0.0
  %1232 = vmatpush.msra.mxu0 0.0
  %1233 = vmatpush.msra.mxu0 0.0
  %1234 = vmatpush.msra.mxu0 %v1159
  %1235 = vmatpush.msra.mxu0 %v1156
  %1236 = vmatpush.msra.mxu0 %v1153
  %1237 = vmatpush.msra.mxu0 %v1150
  %1238 = vmatmul.f32.gmra.mxu0 %v1182
  %v1239 = vpop.f32.mrf.mxu0
  %v1240 = vadd.f32 %v1167, %v1239
  %1241 = vmatmul.f32.gmra.mxu0 %v1185
  %v1242 = vpop.f32.mrf.mxu0
  %v1243 = vadd.f32 %v1171, %v1242
  %1244 = vmatmul.f32.gmra.mxu0 %v1188
  %v1245 = vpop.f32.mrf.mxu0
  %v1246 = vadd.f32 %v1175, %v1245
  %1247 = vmatmul.f32.gmra.mxu0 %v1191
  %v1248 = vpop.f32.mrf.mxu0
  %v1249 = vadd.f32 %v1179, %v1248
  %1250 = vdwg.mxu0
  %1251 = vmatpush.msra.mxu0 0.0
  %1252 = vmatpush.msra.mxu0 0.0
  %1253 = vmatpush.msra.mxu0 0.0
  %1254 = vmatpush.msra.mxu0 0.0
  %1255 = vmatpush.msra.mxu0 0.0
  %1256 = vmatpush.msra.mxu0 0.0
  %1257 = vmatpush.msra.mxu0 0.0
  %1258 = vmatpush.msra.mxu0 0.0
  %1259 = vmatpush.msra.mxu0 0.0
  %1260 = vmatpush.msra.mxu0 0.0
  %1261 = vmatpush.msra.mxu0 0.0
  %1262 = vmatpush.msra.mxu0 0.0
  %1263 = vmatpush.msra.mxu0 %v1160
  %1264 = vmatpush.msra.mxu0 %v1157
  %1265 = vmatpush.msra.mxu0 %v1154
  %1266 = vmatpush.msra.mxu0 %v1151
  %1267 = vmatmul.f32.gmra.mxu0 %v1182
  %v1268 = vpop.f32.mrf.mxu0
  %v1269 = vadd.f32 %v1167, %v1268
  %1270 = vmatmul.f32.gmra.mxu0 %v1185
  %v1271 = vpop.f32.mrf.mxu0
  %v1272 = vadd.f32 %v1171, %v1271
  %1273 = vmatmul.f32.gmra.mxu0 %v1188
  %v1274 = vpop.f32.mrf.mxu0
  %v1275 = vadd.f32 %v1175, %v1274
  %1276 = vmatmul.f32.gmra.mxu0 %v1191
  %v1277 = vpop.f32.mrf.mxu0
  %v1278 = vadd.f32 %v1179, %v1277
  %1279 = vdwg.mxu0
  %v1281 = vsel %vm966, %v1269, 0
  %v1284 = vsel %vm966, %v1272, 0
  %v1287 = vsel %vm966, %v1275, 0
  %v1290 = vsel %vm966, %v1278, 0
  %1292 = vmatpush.msra.mxu0 %v482
  %1293 = vmatpush.msra.mxu0 %v481
  %1294 = vmatpush.msra.mxu0 %v480
  %1295 = vmatpush.msra.mxu0 %v479
  %1296 = vmatpush.msra.mxu0 %v478
  %1297 = vmatpush.msra.mxu0 %v477
  %1298 = vmatpush.msra.mxu0 %v476
  %1299 = vmatpush.msra.mxu0 %v475
  %1300 = vmatpush.msra.mxu0 %v474
  %1301 = vmatpush.msra.mxu0 %v473
  %1302 = vmatpush.msra.mxu0 %v472
  %1303 = vmatpush.msra.mxu0 %v471
  %1304 = vmatpush.msra.mxu0 %v470
  %1305 = vmatpush.msra.mxu0 %v469
  %1306 = vmatpush.msra.mxu0 %v468
  %1307 = vmatpush.msra.mxu0 %v467
  %1308 = vmatmul.f32.gmra.mxu0 %v1211
  %v1309 = vpop.f32.mrf.mxu0
  %v1310 = vadd.f32 0.0, %v1309
  %1311 = vmatmul.f32.gmra.mxu0 %v1214
  %v1312 = vpop.f32.mrf.mxu0
  %v1313 = vadd.f32 0.0, %v1312
  %1314 = vmatmul.f32.gmra.mxu0 %v1217
  %v1315 = vpop.f32.mrf.mxu0
  %v1316 = vadd.f32 0.0, %v1315
  %1317 = vmatmul.f32.gmra.mxu0 %v1220
  %v1318 = vpop.f32.mrf.mxu0
  %v1319 = vadd.f32 0.0, %v1318
  %1320 = vdwg.mxu0
  %1321 = vmatpush.msra.mxu0 %v498
  %1322 = vmatpush.msra.mxu0 %v497
  %1323 = vmatpush.msra.mxu0 %v496
  %1324 = vmatpush.msra.mxu0 %v495
  %1325 = vmatpush.msra.mxu0 %v494
  %1326 = vmatpush.msra.mxu0 %v493
  %1327 = vmatpush.msra.mxu0 %v492
  %1328 = vmatpush.msra.mxu0 %v491
  %1329 = vmatpush.msra.mxu0 %v490
  %1330 = vmatpush.msra.mxu0 %v489
  %1331 = vmatpush.msra.mxu0 %v488
  %1332 = vmatpush.msra.mxu0 %v487
  %1333 = vmatpush.msra.mxu0 %v486
  %1334 = vmatpush.msra.mxu0 %v485
  %1335 = vmatpush.msra.mxu0 %v484
  %1336 = vmatpush.msra.mxu0 %v483
  %1337 = vmatmul.f32.gmra.mxu0 %v1240
  %v1338 = vpop.f32.mrf.mxu0
  %v1339 = vadd.f32 %v1310, %v1338
  %1340 = vmatmul.f32.gmra.mxu0 %v1243
  %v1341 = vpop.f32.mrf.mxu0
  %v1342 = vadd.f32 %v1313, %v1341
  %1343 = vmatmul.f32.gmra.mxu0 %v1246
  %v1344 = vpop.f32.mrf.mxu0
  %v1345 = vadd.f32 %v1316, %v1344
  %1346 = vmatmul.f32.gmra.mxu0 %v1249
  %v1347 = vpop.f32.mrf.mxu0
  %v1348 = vadd.f32 %v1319, %v1347
  %1349 = vdwg.mxu0
  %1350 = vmatpush.msra.mxu0 0.0
  %1351 = vmatpush.msra.mxu0 0.0
  %1352 = vmatpush.msra.mxu0 0.0
  %1353 = vmatpush.msra.mxu0 0.0
  %1354 = vmatpush.msra.mxu0 0.0
  %1355 = vmatpush.msra.mxu0 0.0
  %1356 = vmatpush.msra.mxu0 0.0
  %1357 = vmatpush.msra.mxu0 0.0
  %1358 = vmatpush.msra.mxu0 %v506
  %1359 = vmatpush.msra.mxu0 %v505
  %1360 = vmatpush.msra.mxu0 %v504
  %1361 = vmatpush.msra.mxu0 %v503
  %1362 = vmatpush.msra.mxu0 %v502
  %1363 = vmatpush.msra.mxu0 %v501
  %1364 = vmatpush.msra.mxu0 %v500
  %1365 = vmatpush.msra.mxu0 %v499
  %1366 = vmatmul.f32.gmra.mxu0 %v1281
  %v1367 = vpop.f32.mrf.mxu0
  %v1368 = vadd.f32 %v1339, %v1367
  %1369 = vmatmul.f32.gmra.mxu0 %v1284
  %v1370 = vpop.f32.mrf.mxu0
  %v1371 = vadd.f32 %v1342, %v1370
  %1372 = vmatmul.f32.gmra.mxu0 %v1287
  %v1373 = vpop.f32.mrf.mxu0
  %v1374 = vadd.f32 %v1345, %v1373
  %1375 = vmatmul.f32.gmra.mxu0 %v1290
  %v1376 = vpop.f32.mrf.mxu0
  %v1377 = vadd.f32 %v1348, %v1376
  %1378 = vdwg.mxu0
  %v1379 = vld [vmem:[%s3 + $0x80] sm:$0xff]
  %v1380 = vld [vmem:[%s3 + $0x88] sm:$0xff]
  %v1381 = vld [vmem:[%s3 + $0x90] sm:$0xff]
  %v1382 = vld [vmem:[%s3 + $0x98] sm:$0xff]
  %1383 = vset.pattern.permute.xlu0 5
  %1384 = vperm.xlu0 %1383, %v780
  %v1385 = vpop.permute.xlu0 %1384
  %1387 = vset.pattern.permute.xlu0 5
  %1388 = vperm.xlu0 %1387, %v781
  %v1389 = vpop.permute.xlu0 %1388
  %1391 = vset.pattern.permute.xlu0 5
  %1392 = vperm.xlu0 %1391, %v782
  %v1393 = vpop.permute.xlu0 %1392
  %1395 = vset.pattern.permute.xlu0 5
  %1396 = vperm.xlu0 %1395, %v783
  %v1397 = vpop.permute.xlu0 %1396
  %vm1399 = vcmask 326656
  %v1401 = vsel %vm1399, %v1379, 0
  %v1404 = vsel %vm1399, %v1380, 0
  %v1407 = vsel %vm1399, %v1381, 0
  %v1410 = vsel %vm1399, %v1382, 0
  %1412 = vmatpush.msra.mxu0 0.0
  %1413 = vmatpush.msra.mxu0 0.0
  %1414 = vmatpush.msra.mxu0 0.0
  %1415 = vmatpush.msra.mxu0 0.0
  %1416 = vmatpush.msra.mxu0 0.0
  %1417 = vmatpush.msra.mxu0 0.0
  %1418 = vmatpush.msra.mxu0 0.0
  %1419 = vmatpush.msra.mxu0 0.0
  %1420 = vmatpush.msra.mxu0 0.0
  %1421 = vmatpush.msra.mxu0 0.0
  %1422 = vmatpush.msra.mxu0 0.0
  %1423 = vmatpush.msra.mxu0 %v1377
  %1424 = vmatpush.msra.mxu0 %v1374
  %1425 = vmatpush.msra.mxu0 %v1371
  %1426 = vmatpush.msra.mxu0 %v1368
  %1427 = vmatpush.msra.mxu0 %v20
  %1428 = vmatmul.f32.gmra.mxu0 %v1401
  %v1429 = vpop.f32.mrf.mxu0
  %v1430 = vadd.f32 %v1385, %v1429
  %1431 = vmatmul.f32.gmra.mxu0 %v1404
  %v1432 = vpop.f32.mrf.mxu0
  %v1433 = vadd.f32 %v1389, %v1432
  %1434 = vmatmul.f32.gmra.mxu0 %v1407
  %v1435 = vpop.f32.mrf.mxu0
  %v1436 = vadd.f32 %v1393, %v1435
  %1437 = vmatmul.f32.gmra.mxu0 %v1410
  %v1438 = vpop.f32.mrf.mxu0
  %v1439 = vadd.f32 %v1397, %v1438
  %1440 = vdwg.mxu0
  %v1441 = vmax.f32 %v1430, 0.0
  %v1442 = vmax.f32 %v1433, 0.0
  %v1443 = vmax.f32 %v1436, 0.0
  %v1444 = vmax.f32 %v1439, 0.0
  %v1445 = vld [vmem:[%s3 + $0xa0] sm:$0xff]
  %v1446 = vld [vmem:[%s3 + $0xa8] sm:$0xff]
  %v1447 = vld [vmem:[%s3 + $0xb0] sm:$0xff]
  %v1448 = vld [vmem:[%s3 + $0xb8] sm:$0xff]
  %1449 = vset.pattern.permute.xlu0 6
  %1450 = vperm.xlu0 %1449, %v780
  %v1451 = vpop.permute.xlu0 %1450
  %1453 = vset.pattern.permute.xlu0 6
  %1454 = vperm.xlu0 %1453, %v781
  %v1455 = vpop.permute.xlu0 %1454
  %1457 = vset.pattern.permute.xlu0 6
  %1458 = vperm.xlu0 %1457, %v782
  %v1459 = vpop.permute.xlu0 %1458
  %1461 = vset.pattern.permute.xlu0 6
  %1462 = vperm.xlu0 %1461, %v783
  %v1463 = vpop.permute.xlu0 %1462
  %v1466 = vsel %vm848, %v1445, 0
  %v1469 = vsel %vm848, %v1446, 0
  %v1472 = vsel %vm848, %v1447, 0
  %v1475 = vsel %vm848, %v1448, 0
  %1477 = vmatpush.msra.mxu0 0.0
  %1478 = vmatpush.msra.mxu0 0.0
  %1479 = vmatpush.msra.mxu0 0.0
  %1480 = vmatpush.msra.mxu0 0.0
  %1481 = vmatpush.msra.mxu0 0.0
  %1482 = vmatpush.msra.mxu0 0.0
  %1483 = vmatpush.msra.mxu0 0.0
  %1484 = vmatpush.msra.mxu0 0.0
  %1485 = vmatpush.msra.mxu0 0.0
  %1486 = vmatpush.msra.mxu0 0.0
  %1487 = vmatpush.msra.mxu0 0.0
  %1488 = vmatpush.msra.mxu0 0.0
  %1489 = vmatpush.msra.mxu0 %v1444
  %1490 = vmatpush.msra.mxu0 %v1443
  %1491 = vmatpush.msra.mxu0 %v1442
  %1492 = vmatpush.msra.mxu0 %v1441
  %1493 = vmatmul.f32.gmra.mxu0 %v1466
  %v1494 = vpop.f32.mrf.mxu0
  %v1495 = vadd.f32 %v1451, %v1494
  %1496 = vmatmul.f32.gmra.mxu0 %v1469
  %v1497 = vpop.f32.mrf.mxu0
  %v1498 = vadd.f32 %v1455, %v1497
  %1499 = vmatmul.f32.gmra.mxu0 %v1472
  %v1500 = vpop.f32.mrf.mxu0
  %v1501 = vadd.f32 %v1459, %v1500
  %1502 = vmatmul.f32.gmra.mxu0 %v1475
  %v1503 = vpop.f32.mrf.mxu0
  %v1504 = vadd.f32 %v1463, %v1503
  %1505 = vdwg.mxu0
  %v1506 = vsel %vm581, %v1495, 0.0
  %v1507 = vsel %vm581, %v1498, 0.0
  %v1508 = vadd.f32 %v1506, %v1507
  %v1509 = vsel %vm581, %v1501, 0.0
  %v1510 = vadd.f32 %v1508, %v1509
  %v1511 = vsel %vm581, %v1504, 0.0
  %v1512 = vadd.f32 %v1510, %v1511
  %v1513 = vrot.slane %v1512, 4
  %v1514 = vadd.f32 %v1512, %v1513
  %v1515 = vrot.slane %v1514, 2
  %v1516 = vadd.f32 %v1514, %v1515
  %v1517 = vrot.slane %v1516, 1
  %v1518 = vadd.f32 %v1516, %v1517
  %v1519 = vmul.f32 %v1518, %v986
  %v1520 = vsub.f32 %v1495, %v1519
  %v1521 = vsub.f32 %v1498, %v1519
  %v1522 = vsub.f32 %v1501, %v1519
  %v1523 = vsub.f32 %v1504, %v1519
  %v1524 = vmul.f32 %v1520, %v1520
  %v1525 = vmul.f32 %v1521, %v1521
  %v1526 = vmul.f32 %v1522, %v1522
  %v1527 = vmul.f32 %v1523, %v1523
  %v1528 = vsel %vm581, %v1524, 0.0
  %v1529 = vsel %vm581, %v1525, 0.0
  %v1530 = vadd.f32 %v1528, %v1529
  %v1531 = vsel %vm581, %v1526, 0.0
  %v1532 = vadd.f32 %v1530, %v1531
  %v1533 = vsel %vm581, %v1527, 0.0
  %v1534 = vadd.f32 %v1532, %v1533
  %v1535 = vrot.slane %v1534, 4
  %v1536 = vadd.f32 %v1534, %v1535
  %v1537 = vrot.slane %v1536, 2
  %v1538 = vadd.f32 %v1536, %v1537
  %v1539 = vrot.slane %v1538, 1
  %v1540 = vadd.f32 %v1538, %v1539
  %v1541 = vmul.f32 %v1540, %v986
  %v1542 = vadd.f32 %v1541, 1e-05
  %v1543 = vrsqrt.pop %v1542
  %v1544 = vmul.f32 %v1543, %v1542
  %v1545 = vmul.f32 %v1544, %v1543
  %v1546 = vmul.f32 0.5, %v1545
  %v1547 = vsub.f32 1.5, %v1546
  %v1548 = vmul.f32 %v1543, %v1547
  %vm1549 = vweird.f32 %v1542
  %vm1550 = vweird.f32 %v1543
  %vm1551 = vmor %vm1549, %vm1550
  %v1552 = vsel %vm1551, %v1543, %v1548
  %1553 = vset.pattern.permute.xlu0 7
  %1554 = vperm.xlu0 %1553, %v780
  %v1555 = vpop.permute.xlu0 %1554
  %1557 = vset.pattern.permute.xlu0 7
  %1558 = vperm.xlu0 %1557, %v781
  %v1559 = vpop.permute.xlu0 %1558
  %1561 = vset.pattern.permute.xlu0 7
  %1562 = vperm.xlu0 %1561, %v782
  %v1563 = vpop.permute.xlu0 %1562
  %1565 = vset.pattern.permute.xlu0 7
  %1566 = vperm.xlu0 %1565, %v783
  %v1567 = vpop.permute.xlu0 %1566
  %v1569 = vmul.f32 %v1555, %v1552
  %v1570 = vmul.f32 %v1559, %v1552
  %v1571 = vmul.f32 %v1563, %v1552
  %v1572 = vmul.f32 %v1567, %v1552
  %v1573 = vmul.f32 %v1520, %v1569
  %v1574 = vmul.f32 %v1521, %v1570
  %v1575 = vmul.f32 %v1522, %v1571
  %v1576 = vmul.f32 %v1523, %v1572
  %1577 = vset.pattern.permute.xlu0 8
  %1578 = vperm.xlu0 %1577, %v780
  %v1579 = vpop.permute.xlu0 %1578
  %1581 = vset.pattern.permute.xlu0 8
  %1582 = vperm.xlu0 %1581, %v781
  %v1583 = vpop.permute.xlu0 %1582
  %1585 = vset.pattern.permute.xlu0 8
  %1586 = vperm.xlu0 %1585, %v782
  %v1587 = vpop.permute.xlu0 %1586
  %1589 = vset.pattern.permute.xlu0 8
  %1590 = vperm.xlu0 %1589, %v783
  %v1591 = vpop.permute.xlu0 %1590
  %v1593 = vadd.f32 %v1573, %v1579
  %v1594 = vadd.f32 %v1574, %v1583
  %v1595 = vadd.f32 %v1575, %v1587
  %v1596 = vadd.f32 %v1576, %v1591
  %v1597 = vmax.f32 %v1593, 0.0
  %v1598 = vmax.f32 %v1594, 0.0
  %v1599 = vmax.f32 %v1595, 0.0
  %v1600 = vmax.f32 %v1596, 0.0
  %v1601 = vld [vmem:[%s3 + $0xc0] sm:$0xf]
  %v1602 = vld [vmem:[%s4] sm:$0xf]
  %1604 = vset.pattern.permute.xlu0 9
  %1605 = vperm.xlu0 %1604, %v1602
  %v1606 = vpop.permute.xlu0 %1605
  %v1609 = vsel %vm848, %v1601, 0
  %1611 = vmatpush.msra.mxu0 0.0
  %1612 = vmatpush.msra.mxu0 0.0
  %1613 = vmatpush.msra.mxu0 0.0
  %1614 = vmatpush.msra.mxu0 0.0
  %1615 = vmatpush.msra.mxu0 0.0
  %1616 = vmatpush.msra.mxu0 0.0
  %1617 = vmatpush.msra.mxu0 0.0
  %1618 = vmatpush.msra.mxu0 0.0
  %1619 = vmatpush.msra.mxu0 0.0
  %1620 = vmatpush.msra.mxu0 0.0
  %1621 = vmatpush.msra.mxu0 0.0
  %1622 = vmatpush.msra.mxu0 0.0
  %1623 = vmatpush.msra.mxu0 %v1600
  %1624 = vmatpush.msra.mxu0 %v1599
  %1625 = vmatpush.msra.mxu0 %v1598
  %1626 = vmatpush.msra.mxu0 %v1597
  %1627 = vmatmul.f32.gmra.mxu0 %v1609
  %v1628 = vpop.f32.mrf.mxu0
  %v1629 = vadd.f32 %v1606, %v1628
  %1630 = vdwg.mxu0
  %vm1631 = vcmask 650240
  %1632 = vst.msk [vmem:[%s5] sm:$0xf] %vm1631, %v1629
  // Predicated region
  $region22: #{transition_gnn_forward.1} parent=0 // pred_check
    _
  $region23: #{transition_gnn_forward.1} parent=0 // pred_check_branch
    %1634 = sbr.rel (0) target = $region25
  $region24: #{transition_gnn_forward.1} parent=0 // pred_region
    _
  $region25: #{transition_gnn_forward.1} parent=0 // pred_fallthru
    _
  // Predicated region
  $region26: #{transition_gnn_forward.1} parent=0 // pred_check
    _
  $region27: #{transition_gnn_forward.1} parent=0 // pred_check_branch
    %1636 = sbr.rel (0) target = $region29
  $region28: #{transition_gnn_forward.1} parent=0 // pred_region
    _
  $region29: #{transition_gnn_forward.1} parent=0 // pred_fallthru
    _

</llo_original>
